<compile_context>
chip_gen: v5e
topology: v5e:2x2
jax: 0.10.0
libtpu: 0.0.40
codegen_flags: <defaults>
</compile_context>

<pallas_src>
import math
import functools
from types import SimpleNamespace

import numpy as np
import jax
import jax.numpy as jnp
from jax.experimental import pallas as pl
from jax.experimental.pallas import tpu as pltpu

# ----------------------------- small configuration ---------------------------------
N_BATCH = 2
L_E = 8          # EEG sequence length
L_T = 8          # text sequence length
EEG_DIM = 128    # stands in for eeg_dim=840
EMBED_DIM = 256  # stands in for embed_dim=1024
DEC_DIM = EEG_DIM  # decoder_embed_dim == eeg_dim in the original module
FF_E = 256       # stands in for feedforward_dim=2048
FF_U = 512       # stands in for 4096 in the unify branch
NHEAD_E = 4      # stands in for multi_heads=8
NHEAD_U = 4      # stands in for 16
TRANS_LAYERS = 2 # stands in for trans_layers=6
VOCAB = 512      # stands in for 50267
MAX_LEN = 64
NEG_INF = -1e9

# Weight-streaming matmuls (M ~= 16 rows): big N/K tiles keep the grid short and HBM
# saturated; a 512x512 bf16 weight tile is 0.5 MiB -> fine even in v7x's scoped VMEM.
TILE_N = 512
TILE_K = 512


def _round_up(x, m):
    return (x + m - 1) // m * m


def _pick_tile(dim, target, align):
    """Largest tile <= target (multiple of `align`) that divides dim, else full dim.

    All padded dims fed here are multiples of `align`, so a divisor is always found
    (no full-dimension fallback -> no oversized weight blocks on v7x).
    """
    if dim <= target:
        return dim
    t = (target // align) * align
    while t >= align:
        if dim % t == 0:
            return t
        t -= align
    return dim


# ----------------------------- Pallas kernels ---------------------------------------

def _linear_kernel(x_ref, w_ref, b_ref, o_ref, acc_ref, *, act):
    """Tiled X @ W with f32 VMEM accumulator; bias (+ReLU) epilogue fused on last k."""
    @pl.when(pl.program_id(2) == 0)
    def _init():
        acc_ref[...] = jnp.zeros_like(acc_ref)

    acc_ref[...] += jnp.dot(x_ref[...], w_ref[...],
                            preferred_element_type=jnp.float32)

    @pl.when(pl.program_id(2) == pl.num_programs(2) - 1)
    def _finalize():
        y = acc_ref[...] + b_ref[...]
        if act == "relu":
            y = jnp.maximum(y, 0.0)
        o_ref[...] = y.astype(o_ref.dtype)


def _ln_kernel(x_ref, w_ref, b_ref, o_ref):
    x = x_ref[...]
    mu = jnp.mean(x, axis=-1, keepdims=True)
    xc = x - mu
    var = jnp.mean(xc * xc, axis=-1, keepdims=True)
    o_ref[...] = xc * jax.lax.rsqrt(var + 1e-5) * w_ref[...] + b_ref[...]


def _attn_block_kernel(x_ref, bias_ref, wqkv_ref, bqkv_ref, wo_ref, bo_ref,
                       lnw_ref, lnb_ref, o_ref, *, nhead, scale):
    """Fused self-attention block for one batch element:
       qkv projection -> per-head softmax(QK^T*scale + key-padding bias)V ->
       output projection -> residual add -> LayerNorm.   All in VMEM, one HBM store."""
    x_in = x_ref[0]                      # (L, D) bf16
    x = x_in.astype(jnp.float32)         # residual in f32
    bias = bias_ref[0]                   # (1, L) f32 additive key-padding bias
    L, D = x.shape
    Dh = D // nhead

    qkv = jnp.dot(x_in, wqkv_ref[...],
                  preferred_element_type=jnp.float32) + bqkv_ref[...]   # (L, 3D) f32

    heads = []
    for h in range(nhead):                                   # static unrolled
        q = qkv[:, h * Dh:(h + 1) * Dh].astype(jnp.bfloat16)
        k = qkv[:, D + h * Dh:D + (h + 1) * Dh].astype(jnp.bfloat16)
        v = qkv[:, 2 * D + h * Dh:2 * D + (h + 1) * Dh].astype(jnp.bfloat16)
        # q @ k^T without an explicit transpose (contract last dim of both).
        s = jax.lax.dot_general(q, k, (((1,), (1,)), ((), ())),
                                preferred_element_type=jnp.float32) * scale
        s = s + bias
        s = s - jnp.max(s, axis=-1, keepdims=True)
        p = jnp.exp(s)
        p = p * pl.reciprocal(jnp.sum(p, axis=-1, keepdims=True), approx=True)
        heads.append(jnp.dot(p.astype(jnp.bfloat16), v,
                             preferred_element_type=jnp.float32))
    attn = jnp.concatenate(heads, axis=-1)                   # (L, D) f32, lane-dense

    o = jnp.dot(attn.astype(jnp.bfloat16), wo_ref[...],
                preferred_element_type=jnp.float32) + bo_ref[...]
    y = x + o                                                # residual
    mu = jnp.mean(y, axis=-1, keepdims=True)
    yc = y - mu
    var = jnp.mean(yc * yc, axis=-1, keepdims=True)
    out = yc * jax.lax.rsqrt(var + 1e-5) * lnw_ref[...] + lnb_ref[...]
    o_ref[0] = out.astype(o_ref.dtype)


def _ffn_block_kernel(x_ref, w1_ref, b1_ref, w2_ref, b2_ref,
                      lnw_ref, lnb_ref, o_ref):
    """Fused FFN block: relu(x@W1 + b1)@W2 + b2 -> residual add -> LayerNorm."""
    x_in = x_ref[0]                      # (L, D) bf16
    x = x_in.astype(jnp.float32)
    h = jnp.dot(x_in, w1_ref[...], preferred_element_type=jnp.float32) + b1_ref[...]
    h = jnp.maximum(h, 0.0)
    o = jnp.dot(h.astype(jnp.bfloat16), w2_ref[...],
                preferred_element_type=jnp.float32) + b2_ref[...]
    y = x + o
    mu = jnp.mean(y, axis=-1, keepdims=True)
    yc = y - mu
    var = jnp.mean(yc * yc, axis=-1, keepdims=True)
    out = yc * jax.lax.rsqrt(var + 1e-5) * lnw_ref[...] + lnb_ref[...]
    o_ref[0] = out.astype(o_ref.dtype)


# ----------------------------- Pallas wrappers ---------------------------------------

def pack_linear(w, b):
    """Store a linear layer once: bf16 weight zero-padded to 128-multiples, (1,N) f32 bias."""
    din, dout = w.shape
    kp, np_ = _round_up(din, 128), _round_up(dout, 128)
    wp = jnp.zeros((kp, np_), jnp.bfloat16).at[:din, :dout].set(w.astype(jnp.bfloat16))
    bp = jnp.zeros((1, np_), jnp.float32).at[:, :dout].set(
        b.reshape(1, -1).astype(jnp.float32))
    return {"w": wp, "b": bp, "din": din, "dout": dout}


def pallas_linear(x, p, act=None, out_dtype=jnp.float32):
    orig = x.shape
    K = orig[-1]
    Kp, Np = p["w"].shape
    x2 = x.reshape(-1, K).astype(jnp.bfloat16)
    if Kp != K:
        x2 = jnp.pad(x2, ((0, 0), (0, Kp - K)))
    M = x2.shape[0]
    Mp = _round_up(max(M, 16), 16)          # bf16 packs 16 rows per sublane tile
    if Mp != M:
        x2 = jnp.pad(x2, ((0, Mp - M), (0, 0)))
    TM = Mp                                 # rows are small in this model
    TN = _pick_tile(Np, TILE_N, 128)
    TK = _pick_tile(Kp, TILE_K, 128)
    grid = (Mp // TM, Np // TN, Kp // TK)

    w_steps = grid[1] * grid[2]
    if w_steps >= 3:
        # Deep weight-streaming grid (real sizes): keep HBM saturated with 3 buffers.
        w_spec = pl.BlockSpec((TK, TN), lambda i, j, k: (k, j),
                              pipeline_mode=pl.Buffered(3))
    else:
        w_spec = pl.BlockSpec((TK, TN), lambda i, j, k: (k, j))

    out = pl.pallas_call(
        functools.partial(_linear_kernel, act=act),
        out_shape=jax.ShapeDtypeStruct((Mp, Np), out_dtype),
        grid=grid,
        in_specs=[
            pl.BlockSpec((TM, TK), lambda i, j, k: (i, k)),
            w_spec,
            pl.BlockSpec((1, TN), lambda i, j, k: (0, j)),
        ],
        out_specs=pl.BlockSpec((TM, TN), lambda i, j, k: (i, j)),
        scratch_shapes=[pltpu.VMEM((TM, TN), jnp.float32)],
        compiler_params=pltpu.CompilerParams(
            dimension_semantics=("parallel", "parallel", "arbitrary")),
    )(x2, p["w"], p["b"])
    out = out[:M, :p["dout"]]
    return out.reshape(orig[:-1] + (p["dout"],))


def pallas_layernorm(x, w, b):
    orig = x.shape
    D = orig[-1]
    x2 = x.reshape(-1, D).astype(jnp.float32)
    M = x2.shape[0]
    Mp = _round_up(max(M, 8), 8)
    if Mp != M:
        x2 = jnp.pad(x2, ((0, Mp - M), (0, 0)))
    # keep >= 2 grid steps when possible so v7x can shard the parallel axis
    target = max(8, min(256, Mp // 2)) if Mp >= 16 else Mp
    TM = _pick_tile(Mp, target, 8)
    out = pl.pallas_call(
        _ln_kernel,
        out_shape=jax.ShapeDtypeStruct((Mp, D), jnp.float32),
        grid=(Mp // TM,),
        in_specs=[pl.BlockSpec((TM, D), lambda i: (i, 0)),
                  pl.BlockSpec((1, D), lambda i: (0, 0)),
                  pl.BlockSpec((1, D), lambda i: (0, 0))],
        out_specs=pl.BlockSpec((TM, D), lambda i: (i, 0)),
        compiler_params=pltpu.CompilerParams(dimension_semantics=("parallel",)),
    )(x2, w.reshape(1, D).astype(jnp.float32), b.reshape(1, D).astype(jnp.float32))
    if Mp != M:
        out = out[:M]
    return out.reshape(orig)


def pallas_attn_block(x, attn_bias, p, nhead):
    B, L, D = x.shape
    scale = 1.0 / math.sqrt(D // nhead)
    return pl.pallas_call(
        functools.partial(_attn_block_kernel, nhead=nhead, scale=scale),
        out_shape=jax.ShapeDtypeStruct((B, L, D), jnp.bfloat16),
        grid=(B,),
        in_specs=[
            pl.BlockSpec((1, L, D), lambda bi: (bi, 0, 0)),
            pl.BlockSpec((1, 1, L), lambda bi: (bi, 0, 0)),
            pl.BlockSpec((D, 3 * D), lambda bi: (0, 0)),
            pl.BlockSpec((1, 3 * D), lambda bi: (0, 0)),
            pl.BlockSpec((D, D), lambda bi: (0, 0)),
            pl.BlockSpec((1, D), lambda bi: (0, 0)),
            pl.BlockSpec((1, D), lambda bi: (0, 0)),
            pl.BlockSpec((1, D), lambda bi: (0, 0)),
        ],
        out_specs=pl.BlockSpec((1, L, D), lambda bi: (bi, 0, 0)),
        compiler_params=pltpu.CompilerParams(dimension_semantics=("parallel",)),
    )(x.astype(jnp.bfloat16), attn_bias.astype(jnp.float32),
      p["wqkv"], p["bqkv"], p["wo"], p["bo"], p["ln1_w"], p["ln1_b"])


def pallas_ffn_block(x, p):
    B, L, D = x.shape
    FF = p["w1"].shape[1]
    return pl.pallas_call(
        _ffn_block_kernel,
        out_shape=jax.ShapeDtypeStruct((B, L, D), jnp.bfloat16),
        grid=(B,),
        in_specs=[
            pl.BlockSpec((1, L, D), lambda bi: (bi, 0, 0)),
            pl.BlockSpec((D, FF), lambda bi: (0, 0)),
            pl.BlockSpec((1, FF), lambda bi: (0, 0)),
            pl.BlockSpec((FF, D), lambda bi: (0, 0)),
            pl.BlockSpec((1, D), lambda bi: (0, 0)),
            pl.BlockSpec((1, D), lambda bi: (0, 0)),
            pl.BlockSpec((1, D), lambda bi: (0, 0)),
        ],
        out_specs=pl.BlockSpec((1, L, D), lambda bi: (bi, 0, 0)),
        compiler_params=pltpu.CompilerParams(dimension_semantics=("parallel",)),
    )(x.astype(jnp.bfloat16), p["w1"], p["b1"], p["w2"], p["b2"],
      p["ln2_w"], p["ln2_b"])


# ----------------------------- model pieces ------------------------------------------

def make_pe(max_len, d_model):
    """PositionalEncoding buffer: shape (max_len, 1, d_model), matching the torch module."""
    pe = np.zeros((max_len, d_model), np.float32)
    position = np.arange(max_len, dtype=np.float32)[:, None]
    div_term = np.exp(np.arange(0, d_model, 2, dtype=np.float32) * (-math.log(10000.0) / d_model))
    pe[:, 0::2] = np.sin(position * div_term)
    pe[:, 1::2] = np.cos(position * div_term)
    return jnp.asarray(pe[:, None, :])


def encoder_layer_forward(x, pad_invert, p, nhead):
    """nn.TransformerEncoderLayer, batch_first=True, norm_first=False, relu FFN, eval (no dropout).
    Two fused Pallas calls per layer: attention block and FFN block."""
    B, L, _ = x.shape
    attn_bias = (pad_invert.astype(jnp.float32) * NEG_INF).reshape(B, 1, L)
    x = pallas_attn_block(x, attn_bias, p, nhead)   # includes residual + LN1
    x = pallas_ffn_block(x, p)                      # includes residual + LN2
    return x


def transformer_encoder(x, pad_invert, layers, nhead):
    for p in layers:
        x = encoder_layer_forward(x, pad_invert, p, nhead)
    return x


def pooler(emb, mask):
    emb = emb.astype(jnp.float32)
    return jnp.sum(emb * mask[..., None], axis=1) / jnp.sum(mask, axis=-1, keepdims=True)


def masked_pooler(emb, mask, masked_indices):
    emb = emb.astype(jnp.float32)
    m = mask * (1.0 - masked_indices.astype(jnp.float32))
    return jnp.sum(emb * m[..., None], axis=1) / jnp.sum(m, axis=-1, keepdims=True)


def xent(logits, labels):
    logp = jax.nn.log_softmax(logits, axis=-1)
    return -jnp.mean(logp[jnp.arange(logits.shape[0]), labels])


def contrastive_logits_loss(eeg_emb, eeg_attn, text_emb, text_attn, mlm_indices):
    B = eeg_emb.shape[0]
    eeg_f = pooler(eeg_emb, eeg_attn)
    sent_f = masked_pooler(text_emb, text_attn, mlm_indices)
    logit_scale = jnp.float32(math.log(1.0 / 0.07))  # used un-exponentiated, as in the torch code
    eeg_f = eeg_f / jnp.linalg.norm(eeg_f, axis=-1, keepdims=True)
    sent_f = sent_f / jnp.linalg.norm(sent_f, axis=-1, keepdims=True)
    logits_e = logit_scale * eeg_f @ sent_f.T
    logits_t = logit_scale * sent_f @ eeg_f.T
    labels = jnp.arange(B)
    return (xent(logits_e, labels) + xent(logits_t, labels)) / 2.0


# ----------------------------- host-side masking (glue) -------------------------------

def eeg_masking_contain_last_position(x, mask_ratio, attention_mask, rng):
    am = np.asarray(attention_mask)
    N, L = am.shape
    mam = am.copy()
    ids_restore = []
    for i in range(N):
        masked_indices = []
        nz = np.nonzero(am[i])[0]
        last = int(nz[-1])
        mam[i, last] = 0
        masked_indices.append(last)
        mask_indices = np.nonzero(mam[i])[0]
        num_mask = int((len(mask_indices) + 1) * mask_ratio) - 1
        if num_mask > 0:
            chosen = mask_indices[rng.permutation(len(mask_indices))[:num_mask]]
            mam[i, chosen] = 0
            masked_indices.extend(int(c) for c in chosen)
        ids_restore.append(np.array(masked_indices, dtype=np.int32))
    mam_j = jnp.asarray(mam, jnp.float32)
    masked_x = x * mam_j[..., None]
    invert = 1.0 - mam_j
    return masked_x, mam_j, invert, ids_restore


def mask_batch_text_tokens(input_ids, mlm_probability, rng,
                           pad_id=1, mask_id=3, special_ids=(0, 1, 2)):
    # TODO(synk): MvpTokenizer is unavailable; special-token / pad handling is a fixed-id stand-in.
    inputs = np.array(input_ids).copy()
    labels = inputs.copy()
    prob = np.full(labels.shape, mlm_probability)
    special = np.isin(labels, list(special_ids))
    prob[special] = 0.0
    prob[labels == pad_id] = 0.0
    masked = rng.random(labels.shape) < prob
    if not masked.any():
        masked[0, 1] = True
    labels[~masked] = -100
    inputs[masked] = mask_id
    mlm_indices = (labels != pad_id) & (labels != -100)
    return (jnp.asarray(inputs, jnp.int32), jnp.asarray(labels, jnp.int32),
            jnp.asarray(mlm_indices))


# ----------------------------- parameter init -----------------------------------------

def init_params(key):
    keys = iter(jax.random.split(key, 128))

    def lin_raw(din, dout):
        limit = math.sqrt(6.0 / (din + dout))  # xavier_uniform, zero bias
        w = jax.random.uniform(next(keys), (din, dout), jnp.float32, -limit, limit)
        return w, jnp.zeros((dout,), jnp.float32)

    def layer(d, ff):
        p = {}
        wq, _ = lin_raw(d, d)
        wk, _ = lin_raw(d, d)
        wv, _ = lin_raw(d, d)
        p["wqkv"] = jnp.concatenate([wq, wk, wv], axis=1).astype(jnp.bfloat16)
        p["bqkv"] = jnp.zeros((1, 3 * d), jnp.float32)
        wo, bo = lin_raw(d, d)
        p["wo"], p["bo"] = wo.astype(jnp.bfloat16), bo.reshape(1, d)
        w1, b1 = lin_raw(d, ff)
        p["w1"], p["b1"] = w1.astype(jnp.bfloat16), b1.reshape(1, ff)
        w2, b2 = lin_raw(ff, d)
        p["w2"], p["b2"] = w2.astype(jnp.bfloat16), b2.reshape(1, d)
        p["ln1_w"], p["ln1_b"] = jnp.ones((1, d), jnp.float32), jnp.zeros((1, d), jnp.float32)
        p["ln2_w"], p["ln2_b"] = jnp.ones((1, d), jnp.float32), jnp.zeros((1, d), jnp.float32)
        return p

    params = {}
    params["pe_e"] = make_pe(MAX_LEN, EEG_DIM)
    params["pe_dec"] = make_pe(MAX_LEN, DEC_DIM)
    params["fc_eeg"] = pack_linear(*lin_raw(EEG_DIM, EMBED_DIM))
    params["e_branch"] = [layer(EEG_DIM, FF_E) for _ in range(TRANS_LAYERS)]
    params["t_embed"] = 0.02 * jax.random.normal(next(keys), (VOCAB, EMBED_DIM), jnp.float32)
    params["unify"] = layer(EMBED_DIM, FF_U)
    params["mask_token"] = 0.02 * jax.random.normal(next(keys), (1, 1, DEC_DIM), jnp.float32)
    params["eeg_decoder"] = layer(DEC_DIM, FF_E)
    params["dec_norm_w"], params["dec_norm_b"] = (jnp.ones((DEC_DIM,), jnp.float32),
                                                  jnp.zeros((DEC_DIM,), jnp.float32))
    params["dec_embed"] = pack_linear(*lin_raw(EMBED_DIM, DEC_DIM))
    params["pred_t"] = pack_linear(*lin_raw(EMBED_DIM, VOCAB))
    return params


# ----------------------------- full forward -------------------------------------------

def cetmae_forward(params, eeg, eeg_attn_mask, eeg_attn_mask_invert, text, rng,
                   mask_ratio_e=0.25, mlm_probability=0.5,
                   mlm_loss_weight=0.5, mae_loss_weight=1.0,
                   contrast_loss_weight=0.01, sim_loss_weight=0.0):
    N, L_e, _ = eeg.shape

    # ---------------- forward_encoder ----------------
    # Faithful to the reference: PositionalEncoding indexes dim 0 (= batch, since the
    # model is batch_first), so pe[:N] broadcasts over the sequence dim and
    # e + pos_embed_e(e) == 2*e + pe[:N].  Kept as-is to preserve semantics.
    e = eeg + (eeg + params["pe_e"][:N])
    (e_masked, masked_attention_mask, masked_attention_mask_invert,
     ids_restore) = eeg_masking_contain_last_position(e, mask_ratio_e, eeg_attn_mask, rng)
    text_mlm_input_ids, text_mlm_labels, mlm_indices = mask_batch_text_tokens(
        text.input_ids, mlm_probability, rng)

    e_b = transformer_encoder(e_masked, masked_attention_mask_invert,
                              params["e_branch"], NHEAD_E)
    # TODO(synk): exact (erf) GELU kept as an XLA op rather than fused into the matmul
    # epilogue: erf has no guaranteed Pallas/Mosaic lowering and the activation is tiny here.
    e_b = jax.nn.gelu(pallas_linear(e_b, params["fc_eeg"]), approximate=False)

    # TODO(synk): frozen MvpModel text branch replaced by a deterministic embedding lookup.
    t_b = params["t_embed"][text_mlm_input_ids]

    unify_emb = jnp.concatenate([e_b, t_b], axis=1)
    unify_inv = jnp.concatenate([masked_attention_mask_invert,
                                 text.attention_mask_invert.astype(jnp.float32)], axis=1)
    # TODO(synk): Multi_Stream_TransformerEncoder (per-modality streams) is not provided;
    #             a standard post-norm encoder layer is used and `modality` is ignored.
    unify_out = encoder_layer_forward(unify_emb, unify_inv, params["unify"], NHEAD_U)
    x_eeg = unify_out[:, :L_e, :]
    x_text = unify_out[:, L_e:, :]

    t_inv = text.attention_mask_invert.astype(jnp.float32)
    if e_b.shape[1] == t_b.shape[1]:
        # Batch the two single-modality unify passes into one call (same weights, same
        # per-row masking semantics) -> larger grid / fewer kernel launches.
        cat_in = jnp.concatenate([e_b, t_b], axis=0)
        cat_inv = jnp.concatenate([masked_attention_mask_invert, t_inv], axis=0)
        cat_out = encoder_layer_forward(cat_in, cat_inv, params["unify"], NHEAD_U)
        ce_emb, ct_emb = cat_out[:N], cat_out[N:]
    else:
        ce_emb = encoder_layer_forward(e_b, masked_attention_mask_invert,
                                       params["unify"], NHEAD_U)
        ct_emb = encoder_layer_forward(t_b, t_inv, params["unify"], NHEAD_U)

    # ---------------- forward_decoder ----------------
    e_dec = jax.nn.gelu(pallas_linear(x_eeg, params["dec_embed"]), approximate=False)
    restore_mask_np = np.zeros((N, L_e), dtype=bool)
    for i, idxs in enumerate(ids_restore):
        restore_mask_np[i, idxs] = True
    restore_mask = jnp.asarray(restore_mask_np)
    e_dec = jnp.where(restore_mask[..., None], params["mask_token"], e_dec)
    project_e = e_dec
    d = e_dec + (e_dec + params["pe_dec"][:N])   # same faithful PE quirk as above
    d = encoder_layer_forward(d, eeg_attn_mask_invert, params["eeg_decoder"], NHEAD_E)
    pred_e = pallas_layernorm(d, params["dec_norm_w"], params["dec_norm_b"])

    # ---------------- loss_mae ----------------
    # Dense masked reduction (equivalent to the reference's cat-then-mean over masked tokens).
    rm = restore_mask.astype(jnp.float32)
    per_tok = jnp.mean((pred_e - eeg) ** 2, axis=-1)
    loss_mae = mae_loss_weight * (jnp.sum(per_tok * rm) / jnp.maximum(jnp.sum(rm), 1.0))

    # ---------------- loss_mlm ----------------
    # The reference really does apply GELU to the vocab logits before cross-entropy.
    # TODO(synk): at real vocab size (50267), fuse gelu + online log-softmax + label gather
    # into the N-tiled head kernel so full logits never round-trip HBM.
    mlm_logits = jax.nn.gelu(pallas_linear(x_text, params["pred_t"]), approximate=False)
    V = mlm_logits.shape[-1]
    flat_logits = mlm_logits.reshape(-1, V)
    flat_labels = text_mlm_labels.reshape(-1)
    valid = (flat_labels != -100).astype(jnp.float32)
    logp = jax.nn.log_softmax(flat_logits, axis=-1)
    safe_labels = jnp.clip(flat_labels, 0, V - 1)
    nll = -logp[jnp.arange(flat_labels.shape[0]), safe_labels]
    loss_mlm = mlm_loss_weight * (jnp.sum(nll * valid) / jnp.maximum(jnp.sum(valid), 1.0))

    # ---------------- loss_sim ----------------
    pooled = pooler(project_e, masked_attention_mask)
    # clamp(min=0, max=57) is hard-coded in the reference; kept verbatim.
    last_idx = jnp.clip(jnp.sum(eeg_attn_mask, axis=1).astype(jnp.int32) - 1, 0, 57)
    sent = eeg[jnp.arange(N), last_idx]
    cos = jnp.sum(pooled * sent, -1) / (
        jnp.maximum(jnp.linalg.norm(pooled, axis=-1), 1e-8) *
        jnp.maximum(jnp.linalg.norm(sent, axis=-1), 1e-8))
    loss_sim = sim_loss_weight * (1.0 - jnp.mean(cos))

    # ---------------- loss_c ----------------
    loss_c_raw = contrastive_logits_loss(ce_emb, masked_attention_mask, ct_emb,
                                         text.attention_mask, mlm_indices)
    loss_c_raw = jnp.where(jnp.isnan(loss_c_raw), jnp.float32(1e-5), loss_c_raw)
    loss_c = contrast_loss_weight * loss_c_raw

    # Reference total omits loss_sim (it is returned separately); kept identical.
    loss = loss_mlm + loss_c + loss_mae
    return loss_mae, loss_mlm, loss_c, loss_sim, loss


# ----------------------------- main ----------------------------------------------------

if __name__ == "__main__":
    params = init_params(jax.random.PRNGKey(0))
    rng = np.random.default_rng(0)

    eeg = jax.random.normal(jax.random.PRNGKey(1), (N_BATCH, L_E, EEG_DIM), jnp.float32)
    eeg_attn_mask = jnp.asarray(np.array([[1] * 8, [1] * 6 + [0] * 2], np.float32))
    eeg_attn_mask_invert = 1.0 - eeg_attn_mask

    input_ids = np.array([[0, 10, 23, 44, 87, 120, 61, 2],
                          [0, 7, 99, 250, 31, 400, 5, 2]], np.int32)
    text = SimpleNamespace(
        input_ids=input_ids,
        attention_mask=jnp.ones((N_BATCH, L_T), jnp.float32),
        attention_mask_invert=jnp.zeros((N_BATCH, L_T), jnp.float32),
    )

    out = cetmae_forward(params, eeg, eeg_attn_mask, eeg_attn_mask_invert, text, rng)
    jax.block_until_ready(out[-1])
    print("KERNEL_OK")
</pallas_src>

<mosaic_0001>
module attributes {stable_mosaic.version = 11 : i64} {
  func.func @_attn_block_kernel(%arg0: i32, %arg1: memref<1x8x128xbf16, #tpu.memory_space<vmem>>, %arg2: memref<1x1x8xf32, #tpu.memory_space<vmem>>, %arg3: memref<128x384xbf16, #tpu.memory_space<vmem>>, %arg4: memref<1x384xf32, #tpu.memory_space<vmem>>, %arg5: memref<128x128xbf16, #tpu.memory_space<vmem>>, %arg6: memref<1x128xf32, #tpu.memory_space<vmem>>, %arg7: memref<1x128xf32, #tpu.memory_space<vmem>>, %arg8: memref<1x128xf32, #tpu.memory_space<vmem>>, %arg9: memref<1x8x128xbf16, #tpu.memory_space<vmem>>) attributes {dimension_semantics = [#tpu.dimension_semantics<parallel>], iteration_bounds = array<i64: 2>, scalar_prefetch = 0 : i64, scratch_operands = 0 : i64, tpu.core_type = #tpu.core_type<tc>, window_params = [{transform_indices = @transform_0, window_bounds = array<i64: 1, 8, 128>}, {transform_indices = @transform_1, window_bounds = array<i64: 1, 1, 8>}, {pipeline_mode = #tpu.pipeline_mode<synchronous>, transform_indices = @transform_2, window_bounds = array<i64: 128, 384>}, {pipeline_mode = #tpu.pipeline_mode<synchronous>, transform_indices = @transform_3, window_bounds = array<i64: 1, 384>}, {pipeline_mode = #tpu.pipeline_mode<synchronous>, transform_indices = @transform_4, window_bounds = array<i64: 128, 128>}, {pipeline_mode = #tpu.pipeline_mode<synchronous>, transform_indices = @transform_5, window_bounds = array<i64: 1, 128>}, {pipeline_mode = #tpu.pipeline_mode<synchronous>, transform_indices = @transform_6, window_bounds = array<i64: 1, 128>}, {pipeline_mode = #tpu.pipeline_mode<synchronous>, transform_indices = @transform_7, window_bounds = array<i64: 1, 128>}, {transform_indices = @transform_8, window_bounds = array<i64: 1, 8, 128>}]} {
    %c0 = arith.constant 0 : index
    %c0_0 = arith.constant 0 : index
    %c0_1 = arith.constant 0 : index
    %0 = vector.load %arg1[%c0, %c0_0, %c0_1] : memref<1x8x128xbf16, #tpu.memory_space<vmem>>, vector<1x8x128xbf16>
    %1 = vector.shape_cast %0 : vector<1x8x128xbf16> to vector<8x128xbf16>
    %2 = arith.extf %1 : vector<8x128xbf16> to vector<8x128xf32>
    %c0_2 = arith.constant 0 : index
    %c0_3 = arith.constant 0 : index
    %c0_4 = arith.constant 0 : index
    %3 = vector.load %arg2[%c0_2, %c0_3, %c0_4] : memref<1x1x8xf32, #tpu.memory_space<vmem>>, vector<1x1x8xf32>
    %4 = vector.shape_cast %3 : vector<1x1x8xf32> to vector<1x8xf32>
    %c0_5 = arith.constant 0 : index
    %c0_6 = arith.constant 0 : index
    %5 = vector.load %arg3[%c0_5, %c0_6] : memref<128x384xbf16, #tpu.memory_space<vmem>>, vector<128x384xbf16>
    %cst = arith.constant dense<0.000000e+00> : vector<8x384xf32>
    %6 = tpu.matmul %1, %5, %cst {dimension_numbers = #tpu.dot_dimension_numbers<[1], [0], [0], [1], [0, 0, 1, 1], [], []>} : vector<8x128xbf16>, vector<128x384xbf16>, vector<8x384xf32> -> vector<8x384xf32>
    %c0_7 = arith.constant 0 : index
    %c0_8 = arith.constant 0 : index
    %7 = vector.load %arg4[%c0_7, %c0_8] : memref<1x384xf32, #tpu.memory_space<vmem>>, vector<1x384xf32>
    %8 = vector.broadcast %7 : vector<1x384xf32> to vector<8x384xf32>
    %9 = arith.addf %6, %8 : vector<8x384xf32>
    %10 = vector.extract_strided_slice %9 {offsets = [0, 0], sizes = [8, 32], strides = [1, 1]} : vector<8x384xf32> to vector<8x32xf32>
    %11 = arith.truncf %10 : vector<8x32xf32> to vector<8x32xbf16>
    %12 = vector.extract_strided_slice %9 {offsets = [0, 128], sizes = [8, 32], strides = [1, 1]} : vector<8x384xf32> to vector<8x32xf32>
    %13 = arith.truncf %12 : vector<8x32xf32> to vector<8x32xbf16>
    %14 = vector.extract_strided_slice %9 {offsets = [0, 256], sizes = [8, 32], strides = [1, 1]} : vector<8x384xf32> to vector<8x32xf32>
    %15 = arith.truncf %14 : vector<8x32xf32> to vector<8x32xbf16>
    %cst_9 = arith.constant dense<0.000000e+00> : vector<8x8xf32>
    %16 = tpu.matmul %11, %13, %cst_9 {dimension_numbers = #tpu.dot_dimension_numbers<[1], [1], [0], [0], [0, 0, 1, 0], [], []>} : vector<8x32xbf16>, vector<8x32xbf16>, vector<8x8xf32> -> vector<8x8xf32>
    %cst_10 = arith.constant 0.176776692 : f32
    %17 = vector.broadcast %cst_10 : f32 to vector<8x8xf32>
    %18 = arith.mulf %16, %17 : vector<8x8xf32>
    %19 = vector.broadcast %4 : vector<1x8xf32> to vector<8x8xf32>
    %20 = arith.addf %18, %19 : vector<8x8xf32>
    %cst_11 = arith.constant dense<0xFF800000> : vector<8xf32>
    %21 = vector.multi_reduction <maximumf>, %20, %cst_11 [1] : vector<8x8xf32> to vector<8xf32>
    %22 = vector.shape_cast %21 : vector<8xf32> to vector<8x1xf32>
    %23 = vector.broadcast %22 : vector<8x1xf32> to vector<8x8xf32>
    %24 = arith.subf %20, %23 : vector<8x8xf32>
    %25 = math.exp %24 : vector<8x8xf32>
    %cst_12 = arith.constant dense<0.000000e+00> : vector<8xf32>
    %26 = vector.multi_reduction <add>, %25, %cst_12 [1] : vector<8x8xf32> to vector<8xf32>
    %27 = vector.shape_cast %26 : vector<8xf32> to vector<8x1xf32>
    %28 = tpu.reciprocal %27 {approx = true} : vector<8x1xf32> -> vector<8x1xf32>
    %29 = vector.broadcast %28 : vector<8x1xf32> to vector<8x8xf32>
    %30 = arith.mulf %25, %29 : vector<8x8xf32>
    %31 = arith.truncf %30 : vector<8x8xf32> to vector<8x8xbf16>
    %cst_13 = arith.constant dense<0.000000e+00> : vector<8x32xf32>
    %32 = tpu.matmul %31, %15, %cst_13 {dimension_numbers = #tpu.dot_dimension_numbers<[1], [0], [0], [1], [0, 0, 1, 1], [], []>} : vector<8x8xbf16>, vector<8x32xbf16>, vector<8x32xf32> -> vector<8x32xf32>
    %33 = vector.extract_strided_slice %9 {offsets = [0, 32], sizes = [8, 32], strides = [1, 1]} : vector<8x384xf32> to vector<8x32xf32>
    %34 = arith.truncf %33 : vector<8x32xf32> to vector<8x32xbf16>
    %35 = vector.extract_strided_slice %9 {offsets = [0, 160], sizes = [8, 32], strides = [1, 1]} : vector<8x384xf32> to vector<8x32xf32>
    %36 = arith.truncf %35 : vector<8x32xf32> to vector<8x32xbf16>
    %37 = vector.extract_strided_slice %9 {offsets = [0, 288], sizes = [8, 32], strides = [1, 1]} : vector<8x384xf32> to vector<8x32xf32>
    %38 = arith.truncf %37 : vector<8x32xf32> to vector<8x32xbf16>
    %cst_14 = arith.constant dense<0.000000e+00> : vector<8x8xf32>
    %39 = tpu.matmul %34, %36, %cst_14 {dimension_numbers = #tpu.dot_dimension_numbers<[1], [1], [0], [0], [0, 0, 1, 0], [], []>} : vector<8x32xbf16>, vector<8x32xbf16>, vector<8x8xf32> -> vector<8x8xf32>
    %cst_15 = arith.constant 0.176776692 : f32
    %40 = vector.broadcast %cst_15 : f32 to vector<8x8xf32>
    %41 = arith.mulf %39, %40 : vector<8x8xf32>
    %42 = vector.broadcast %4 : vector<1x8xf32> to vector<8x8xf32>
    %43 = arith.addf %41, %42 : vector<8x8xf32>
    %cst_16 = arith.constant dense<0xFF800000> : vector<8xf32>
    %44 = vector.multi_reduction <maximumf>, %43, %cst_16 [1] : vector<8x8xf32> to vector<8xf32>
    %45 = vector.shape_cast %44 : vector<8xf32> to vector<8x1xf32>
    %46 = vector.broadcast %45 : vector<8x1xf32> to vector<8x8xf32>
    %47 = arith.subf %43, %46 : vector<8x8xf32>
    %48 = math.exp %47 : vector<8x8xf32>
    %cst_17 = arith.constant dense<0.000000e+00> : vector<8xf32>
    %49 = vector.multi_reduction <add>, %48, %cst_17 [1] : vector<8x8xf32> to vector<8xf32>
    %50 = vector.shape_cast %49 : vector<8xf32> to vector<8x1xf32>
    %51 = tpu.reciprocal %50 {approx = true} : vector<8x1xf32> -> vector<8x1xf32>
    %52 = vector.broadcast %51 : vector<8x1xf32> to vector<8x8xf32>
    %53 = arith.mulf %48, %52 : vector<8x8xf32>
    %54 = arith.truncf %53 : vector<8x8xf32> to vector<8x8xbf16>
    %cst_18 = arith.constant dense<0.000000e+00> : vector<8x32xf32>
    %55 = tpu.matmul %54, %38, %cst_18 {dimension_numbers = #tpu.dot_dimension_numbers<[1], [0], [0], [1], [0, 0, 1, 1], [], []>} : vector<8x8xbf16>, vector<8x32xbf16>, vector<8x32xf32> -> vector<8x32xf32>
    %56 = vector.extract_strided_slice %9 {offsets = [0, 64], sizes = [8, 32], strides = [1, 1]} : vector<8x384xf32> to vector<8x32xf32>
    %57 = arith.truncf %56 : vector<8x32xf32> to vector<8x32xbf16>
    %58 = vector.extract_strided_slice %9 {offsets = [0, 192], sizes = [8, 32], strides = [1, 1]} : vector<8x384xf32> to vector<8x32xf32>
    %59 = arith.truncf %58 : vector<8x32xf32> to vector<8x32xbf16>
    %60 = vector.extract_strided_slice %9 {offsets = [0, 320], sizes = [8, 32], strides = [1, 1]} : vector<8x384xf32> to vector<8x32xf32>
    %61 = arith.truncf %60 : vector<8x32xf32> to vector<8x32xbf16>
    %cst_19 = arith.constant dense<0.000000e+00> : vector<8x8xf32>
    %62 = tpu.matmul %57, %59, %cst_19 {dimension_numbers = #tpu.dot_dimension_numbers<[1], [1], [0], [0], [0, 0, 1, 0], [], []>} : vector<8x32xbf16>, vector<8x32xbf16>, vector<8x8xf32> -> vector<8x8xf32>
    %cst_20 = arith.constant 0.176776692 : f32
    %63 = vector.broadcast %cst_20 : f32 to vector<8x8xf32>
    %64 = arith.mulf %62, %63 : vector<8x8xf32>
    %65 = vector.broadcast %4 : vector<1x8xf32> to vector<8x8xf32>
    %66 = arith.addf %64, %65 : vector<8x8xf32>
    %cst_21 = arith.constant dense<0xFF800000> : vector<8xf32>
    %67 = vector.multi_reduction <maximumf>, %66, %cst_21 [1] : vector<8x8xf32> to vector<8xf32>
    %68 = vector.shape_cast %67 : vector<8xf32> to vector<8x1xf32>
    %69 = vector.broadcast %68 : vector<8x1xf32> to vector<8x8xf32>
    %70 = arith.subf %66, %69 : vector<8x8xf32>
    %71 = math.exp %70 : vector<8x8xf32>
    %cst_22 = arith.constant dense<0.000000e+00> : vector<8xf32>
    %72 = vector.multi_reduction <add>, %71, %cst_22 [1] : vector<8x8xf32> to vector<8xf32>
    %73 = vector.shape_cast %72 : vector<8xf32> to vector<8x1xf32>
    %74 = tpu.reciprocal %73 {approx = true} : vector<8x1xf32> -> vector<8x1xf32>
    %75 = vector.broadcast %74 : vector<8x1xf32> to vector<8x8xf32>
    %76 = arith.mulf %71, %75 : vector<8x8xf32>
    %77 = arith.truncf %76 : vector<8x8xf32> to vector<8x8xbf16>
    %cst_23 = arith.constant dense<0.000000e+00> : vector<8x32xf32>
    %78 = tpu.matmul %77, %61, %cst_23 {dimension_numbers = #tpu.dot_dimension_numbers<[1], [0], [0], [1], [0, 0, 1, 1], [], []>} : vector<8x8xbf16>, vector<8x32xbf16>, vector<8x32xf32> -> vector<8x32xf32>
    %79 = vector.extract_strided_slice %9 {offsets = [0, 96], sizes = [8, 32], strides = [1, 1]} : vector<8x384xf32> to vector<8x32xf32>
    %80 = arith.truncf %79 : vector<8x32xf32> to vector<8x32xbf16>
    %81 = vector.extract_strided_slice %9 {offsets = [0, 224], sizes = [8, 32], strides = [1, 1]} : vector<8x384xf32> to vector<8x32xf32>
    %82 = arith.truncf %81 : vector<8x32xf32> to vector<8x32xbf16>
    %83 = vector.extract_strided_slice %9 {offsets = [0, 352], sizes = [8, 32], strides = [1, 1]} : vector<8x384xf32> to vector<8x32xf32>
    %84 = arith.truncf %83 : vector<8x32xf32> to vector<8x32xbf16>
    %cst_24 = arith.constant dense<0.000000e+00> : vector<8x8xf32>
    %85 = tpu.matmul %80, %82, %cst_24 {dimension_numbers = #tpu.dot_dimension_numbers<[1], [1], [0], [0], [0, 0, 1, 0], [], []>} : vector<8x32xbf16>, vector<8x32xbf16>, vector<8x8xf32> -> vector<8x8xf32>
    %cst_25 = arith.constant 0.176776692 : f32
    %86 = vector.broadcast %cst_25 : f32 to vector<8x8xf32>
    %87 = arith.mulf %85, %86 : vector<8x8xf32>
    %88 = vector.broadcast %4 : vector<1x8xf32> to vector<8x8xf32>
    %89 = arith.addf %87, %88 : vector<8x8xf32>
    %cst_26 = arith.constant dense<0xFF800000> : vector<8xf32>
    %90 = vector.multi_reduction <maximumf>, %89, %cst_26 [1] : vector<8x8xf32> to vector<8xf32>
    %91 = vector.shape_cast %90 : vector<8xf32> to vector<8x1xf32>
    %92 = vector.broadcast %91 : vector<8x1xf32> to vector<8x8xf32>
    %93 = arith.subf %89, %92 : vector<8x8xf32>
    %94 = math.exp %93 : vector<8x8xf32>
    %cst_27 = arith.constant dense<0.000000e+00> : vector<8xf32>
    %95 = vector.multi_reduction <add>, %94, %cst_27 [1] : vector<8x8xf32> to vector<8xf32>
    %96 = vector.shape_cast %95 : vector<8xf32> to vector<8x1xf32>
    %97 = tpu.reciprocal %96 {approx = true} : vector<8x1xf32> -> vector<8x1xf32>
    %98 = vector.broadcast %97 : vector<8x1xf32> to vector<8x8xf32>
    %99 = arith.mulf %94, %98 : vector<8x8xf32>
    %100 = arith.truncf %99 : vector<8x8xf32> to vector<8x8xbf16>
    %cst_28 = arith.constant dense<0.000000e+00> : vector<8x32xf32>
    %101 = tpu.matmul %100, %84, %cst_28 {dimension_numbers = #tpu.dot_dimension_numbers<[1], [0], [0], [1], [0, 0, 1, 1], [], []>} : vector<8x8xbf16>, vector<8x32xbf16>, vector<8x32xf32> -> vector<8x32xf32>
    %102 = tpu.concatenate %32, %55, %78, %101 in 1 : vector<8x32xf32>, vector<8x32xf32>, vector<8x32xf32>, vector<8x32xf32> -> vector<8x128xf32>
    %103 = arith.truncf %102 : vector<8x128xf32> to vector<8x128xbf16>
    %c0_29 = arith.constant 0 : index
    %c0_30 = arith.constant 0 : index
    %104 = vector.load %arg5[%c0_29, %c0_30] : memref<128x128xbf16, #tpu.memory_space<vmem>>, vector<128x128xbf16>
    %cst_31 = arith.constant dense<0.000000e+00> : vector<8x128xf32>
    %105 = tpu.matmul %103, %104, %cst_31 {dimension_numbers = #tpu.dot_dimension_numbers<[1], [0], [0], [1], [0, 0, 1, 1], [], []>} : vector<8x128xbf16>, vector<128x128xbf16>, vector<8x128xf32> -> vector<8x128xf32>
    %c0_32 = arith.constant 0 : index
    %c0_33 = arith.constant 0 : index
    %106 = vector.load %arg6[%c0_32, %c0_33] : memref<1x128xf32, #tpu.memory_space<vmem>>, vector<1x128xf32>
    %107 = vector.broadcast %106 : vector<1x128xf32> to vector<8x128xf32>
    %108 = arith.addf %105, %107 : vector<8x128xf32>
    %109 = arith.addf %2, %108 : vector<8x128xf32>
    %cst_34 = arith.constant dense<0.000000e+00> : vector<8xf32>
    %110 = vector.multi_reduction <add>, %109, %cst_34 [1] : vector<8x128xf32> to vector<8xf32>
    %111 = vector.shape_cast %110 : vector<8xf32> to vector<8x1xf32>
    %cst_35 = arith.constant 1.280000e+02 : f32
    %112 = vector.broadcast %cst_35 : f32 to vector<8x1xf32>
    %113 = arith.divf %111, %112 : vector<8x1xf32>
    %114 = vector.broadcast %113 : vector<8x1xf32> to vector<8x128xf32>
    %115 = arith.subf %109, %114 : vector<8x128xf32>
    %116 = arith.mulf %115, %115 : vector<8x128xf32>
    %cst_36 = arith.constant dense<0.000000e+00> : vector<8xf32>
    %117 = vector.multi_reduction <add>, %116, %cst_36 [1] : vector<8x128xf32> to vector<8xf32>
    %118 = vector.shape_cast %117 : vector<8xf32> to vector<8x1xf32>
    %cst_37 = arith.constant 1.280000e+02 : f32
    %119 = vector.broadcast %cst_37 : f32 to vector<8x1xf32>
    %120 = arith.divf %118, %119 : vector<8x1xf32>
    %cst_38 = arith.constant 9.99999974E-6 : f32
    %121 = vector.broadcast %cst_38 : f32 to vector<8x1xf32>
    %122 = arith.addf %120, %121 : vector<8x1xf32>
    %123 = math.rsqrt %122 : vector<8x1xf32>
    %124 = vector.broadcast %123 : vector<8x1xf32> to vector<8x128xf32>
    %125 = arith.mulf %115, %124 : vector<8x128xf32>
    %c0_39 = arith.constant 0 : index
    %c0_40 = arith.constant 0 : index
    %126 = vector.load %arg7[%c0_39, %c0_40] : memref<1x128xf32, #tpu.memory_space<vmem>>, vector<1x128xf32>
    %127 = vector.broadcast %126 : vector<1x128xf32> to vector<8x128xf32>
    %128 = arith.mulf %125, %127 : vector<8x128xf32>
    %c0_41 = arith.constant 0 : index
    %c0_42 = arith.constant 0 : index
    %129 = vector.load %arg8[%c0_41, %c0_42] : memref<1x128xf32, #tpu.memory_space<vmem>>, vector<1x128xf32>
    %130 = vector.broadcast %129 : vector<1x128xf32> to vector<8x128xf32>
    %131 = arith.addf %128, %130 : vector<8x128xf32>
    %132 = arith.truncf %131 : vector<8x128xf32> to vector<8x128xbf16>
    %c0_43 = arith.constant 0 : index
    %c0_44 = arith.constant 0 : index
    %c0_45 = arith.constant 0 : index
    %133 = vector.load %arg9[%c0_43, %c0_44, %c0_45] : memref<1x8x128xbf16, #tpu.memory_space<vmem>>, vector<1x8x128xbf16>
    %134 = vector.shape_cast %133 : vector<1x8x128xbf16> to vector<8x128xbf16>
    %135 = vector.shape_cast %132 : vector<8x128xbf16> to vector<1x8x128xbf16>
    tpu.vector_store %arg9[%c0_43, %c0_44, %c0_45], %135 {strides = array<i32>} : memref<1x8x128xbf16, #tpu.memory_space<vmem>>, vector<1x8x128xbf16>,
    return
  }
  func.func @transform_0(%arg0: i32) -> (i32, i32, i32) {
    %c0_i32 = arith.constant 0 : i32
    %c0_i32_0 = arith.constant 0 : i32
    %c0_i32_1 = arith.constant 0 : i32
    return %arg0, %c0_i32, %c0_i32_0 : i32, i32, i32
  }
  func.func @transform_1(%arg0: i32) -> (i32, i32, i32) {
    %c0_i32 = arith.constant 0 : i32
    %c0_i32_0 = arith.constant 0 : i32
    %c0_i32_1 = arith.constant 0 : i32
    return %arg0, %c0_i32, %c0_i32_0 : i32, i32, i32
  }
  func.func @transform_2(%arg0: i32) -> (i32, i32) {
    %c0_i32 = arith.constant 0 : i32
    %c0_i32_0 = arith.constant 0 : i32
    %c0_i32_1 = arith.constant 0 : i32
    return %c0_i32, %c0_i32_0 : i32, i32
  }
  func.func @transform_3(%arg0: i32) -> (i32, i32) {
    %c0_i32 = arith.constant 0 : i32
    %c0_i32_0 = arith.constant 0 : i32
    %c0_i32_1 = arith.constant 0 : i32
    return %c0_i32, %c0_i32_0 : i32, i32
  }
  func.func @transform_4(%arg0: i32) -> (i32, i32) {
    %c0_i32 = arith.constant 0 : i32
    %c0_i32_0 = arith.constant 0 : i32
    %c0_i32_1 = arith.constant 0 : i32
    return %c0_i32, %c0_i32_0 : i32, i32
  }
  func.func @transform_5(%arg0: i32) -> (i32, i32) {
    %c0_i32 = arith.constant 0 : i32
    %c0_i32_0 = arith.constant 0 : i32
    %c0_i32_1 = arith.constant 0 : i32
    return %c0_i32, %c0_i32_0 : i32, i32
  }
  func.func @transform_6(%arg0: i32) -> (i32, i32) {
    %c0_i32 = arith.constant 0 : i32
    %c0_i32_0 = arith.constant 0 : i32
    %c0_i32_1 = arith.constant 0 : i32
    return %c0_i32, %c0_i32_0 : i32, i32
  }
  func.func @transform_7(%arg0: i32) -> (i32, i32) {
    %c0_i32 = arith.constant 0 : i32
    %c0_i32_0 = arith.constant 0 : i32
    %c0_i32_1 = arith.constant 0 : i32
    return %c0_i32, %c0_i32_0 : i32, i32
  }
  func.func @transform_8(%arg0: i32) -> (i32, i32, i32) {
    %c0_i32 = arith.constant 0 : i32
    %c0_i32_0 = arith.constant 0 : i32
    %c0_i32_1 = arith.constant 0 : i32
    return %arg0, %c0_i32, %c0_i32_0 : i32, i32, i32
  }
}

</mosaic_0001>

<llo_original>
// kernel: tpu_custom_call.1
$region0: #{tpu_custom_call.1}
  #allocation0 [shape = 'u32[]', space=smem, size = 0x4, offset = 0x4, fixed_abs, tag = 'smem constant byte address 0x4 - core index']
  #allocation1 [shape = 'u32[72,128]{1,0:T(1,128)}', space=vmem, size = 0x9000, scoped, tag = 'internal scratch']
  %s0 = inlined_call_operand.hbm [shape: bf16[2,8,128], index: 0, kind: input, shape index: {}]
  %s1 = inlined_call_operand.hbm [shape: f32[2,1,8], index: 1, kind: input, shape index: {}]
  %s2 = inlined_call_operand.hbm [shape: bf16[128,384], index: 2, kind: input, shape index: {}]
  %s3 = inlined_call_operand.hbm [shape: f32[1,384], index: 3, kind: input, shape index: {}]
  %s4 = inlined_call_operand.hbm [shape: bf16[128,128], index: 4, kind: input, shape index: {}]
  %s5 = inlined_call_operand.vmem [shape: f32[1,128], index: 5, kind: input, shape index: {}]
  %s6 = inlined_call_operand.vmem [shape: f32[1,128], index: 6, kind: input, shape index: {}]
  %s7 = inlined_call_operand.vmem [shape: f32[1,128], index: 7, kind: input, shape index: {}]
  %s8 = inlined_call_operand.hbm [shape: bf16[2,8,128], index: 8, kind: output, shape index: {}]
  %s9 = sld [smem:[#allocation0]]
  $region85: #{tpu_custom_call.1} parent=0
    _
  %s11 = ssub.s32 1, %s9
  %s12 = scalar_select 0, %s11, %s9
  $region1: #{tpu_custom_call.1} parent=0
    #allocation2 [shape = 'u8[4096]{0}', space=vmem, size = 0x1000, scoped, tag = 'input window, operand 0']
    #allocation3 [shape = 's32[2]{0}', space=sflag, size = 0x8, scoped, tag = 'scoped memory for tpu_custom_call.1']
    #allocation4 [shape = 's32[2]{0}', space=sflag, size = 0x8, scoped, tag = 'scoped memory for tpu_custom_call.1']
    #allocation5 [shape = 'u8[1024]{0}', space=vmem, size = 0x400, scoped, tag = 'input window, operand 1']
    #allocation6 [shape = 's32[2]{0}', space=sflag, size = 0x8, scoped, tag = 'scoped memory for tpu_custom_call.1']
    #allocation7 [shape = 'u8[98304]{0}', space=vmem, size = 0x18000, scoped, tag = 'input window, operand 2, single buffered']
    #allocation8 [shape = 'u8[1536]{0}', space=vmem, size = 0x800, scoped, tag = 'input window, operand 3, single buffered']
    #allocation9 [shape = 's32[1]{0}', space=sflag, size = 0x4, scoped, tag = 'scoped memory for tpu_custom_call.1']
    #allocation10 [shape = 'u8[32768]{0}', space=vmem, size = 0x8000, scoped, tag = 'input window, operand 4, single buffered']
    #allocation11 [shape = 'u8[4096]{0}', space=vmem, size = 0x1000, scoped, tag = 'output window, operand 0']
    %13 = vsyncpa [#allocation3], 0
    %s14 = scalar_lea.sflag [#allocation3], 1
    %15 = vsyncpa %s14, 0
    %16 = vsyncpa [#allocation6], 0
    %s17 = scalar_lea.sflag [#allocation6], 1
    %18 = vsyncpa %s17, 0
    %19 = vsyncpa [#allocation9], 0
    %20 = vsyncpa [#allocation4], 0
    %s21 = scalar_lea.sflag [#allocation4], 1
    %22 = vsyncpa %s21, 0
    loop: start=0, step=1, limit=4
    $region2: #{tpu_custom_call.1} parent=1 // loop_pre_header
      _
    $region3: #{tpu_custom_call.1} parent=1 // loop_header
      %s24 = sphi 0, %s28
      %p25 = scmp.ge.s32.totalorder %s24, 4
      %s34 = sphi 0, %s36
      %s37 = sphi 0, %s34
      %s38 = sphi 0, %s37
      %s54 = sphi 0, %s38
      %s60 = sphi 0, %s62
      %s63 = sphi 0, %s60
      %s64 = sphi 0, %s63
      %s80 = sphi 0, %s64
      %s84 = sphi 0, %s84
      %s86 = sphi 0, %s84
      %s87 = sphi 0, %s86
      %s101 = sphi 0, %s87
      %s105 = sphi 0, %s105
      %s107 = sphi 0, %s105
      %s108 = sphi 0, %s107
      %s122 = sphi 0, %s108
      %s126 = sphi 0, %s126
      %s128 = sphi 0, %s126
      %s129 = sphi 0, %s128
      %s143 = sphi 0, %s129
      %s147 = sphi 0, %s147
      %s149 = sphi 0, %s147
      %s150 = sphi 0, %s149
      %s164 = sphi 0, %s150
      %s168 = sphi 0, %s168
      %s170 = sphi 0, %s168
      %s171 = sphi 0, %s170
      %s185 = sphi 0, %s171
      %s189 = sphi 0, %s189
      %s191 = sphi 0, %s189
      %s192 = sphi 0, %s191
      %s206 = sphi 0, %s192
      %s212 = sphi 0, %s214
      %s215 = sphi 0, %s212
      %s216 = sphi 0, %s215
      %s232 = sphi 0, %s216
    $region4: #{tpu_custom_call.1} parent=1 // loop_header_branch
      %27 = sbr.rel (%p25) target = $region8
    $region5: #{tpu_custom_call.1} parent=1 // loop_body
      %s29 = ssub.s32 %s24, 1
      %s30 = ssub.s32 %s24, 2
      %s31 = sadd.s32 %s24, 1
      %s32 = ssub.s32 %s24, %s31
      %p33 = scmp.eq.s32.totalorder %s32, 0
      %s35 = sadd.s32 %s34, 1
      %s36 = scalar_select %p33, %s34, %s35
      %p39 = pneg %p33
      %p40 = scmp.eq.s32.totalorder %s24, 1
      %p41 = por %p39, %p40
      %p42 = scmp.ne.s32.totalorder %s34, %s37
      %p43 = scmp.eq.s32.totalorder %s24, 0
      %p44 = por %p42, %p43
      %p45 = scmp.ne.s32.totalorder %s34, %s37
      %p46 = scmp.eq.s32.totalorder %s29, 1
      %p47 = por %p45, %p46
      %p48 = scmp.ne.s32.totalorder %s37, %s38
      %p49 = scmp.eq.s32.totalorder %s29, 0
      %p50 = por %p48, %p49
      %p51 = scmp.ne.s32.totalorder %s37, %s38
      %p52 = scmp.eq.s32.totalorder %s30, 1
      %p53 = por %p51, %p52
      %p55 = scmp.ne.s32.totalorder %s38, %s54
      %p56 = scmp.eq.s32.totalorder %s30, 0
      %p57 = por %p55, %p56
      %s58 = ssub.s32 %s24, %s31
      %p59 = scmp.eq.s32.totalorder %s58, 0
      %s61 = sadd.s32 %s60, 1
      %s62 = scalar_select %p59, %s60, %s61
      %p65 = pneg %p59
      %p66 = scmp.eq.s32.totalorder %s24, 1
      %p67 = por %p65, %p66
      %p68 = scmp.ne.s32.totalorder %s60, %s63
      %p69 = scmp.eq.s32.totalorder %s24, 0
      %p70 = por %p68, %p69
      %p71 = scmp.ne.s32.totalorder %s60, %s63
      %p72 = scmp.eq.s32.totalorder %s29, 1
      %p73 = por %p71, %p72
      %p74 = scmp.ne.s32.totalorder %s63, %s64
      %p75 = scmp.eq.s32.totalorder %s29, 0
      %p76 = por %p74, %p75
      %p77 = scmp.ne.s32.totalorder %s63, %s64
      %p78 = scmp.eq.s32.totalorder %s30, 1
      %p79 = por %p77, %p78
      %p81 = scmp.ne.s32.totalorder %s64, %s80
      %p82 = scmp.eq.s32.totalorder %s30, 0
      %p83 = por %p81, %p82
      %s85 = sadd.s32 %s84, 1
      %p88 = scmp.eq.s32.totalorder %s24, 1
      %p89 = scmp.ne.s32.totalorder %s84, %s86
      %p90 = scmp.eq.s32.totalorder %s24, 0
      %p91 = por %p89, %p90
      %p92 = scmp.ne.s32.totalorder %s84, %s86
      %p93 = scmp.eq.s32.totalorder %s29, 1
      %p94 = por %p92, %p93
      %p95 = scmp.ne.s32.totalorder %s86, %s87
      %p96 = scmp.eq.s32.totalorder %s29, 0
      %p97 = por %p95, %p96
      %p98 = scmp.ne.s32.totalorder %s86, %s87
      %p99 = scmp.eq.s32.totalorder %s30, 1
      %p100 = por %p98, %p99
      %p102 = scmp.ne.s32.totalorder %s87, %s101
      %p103 = scmp.eq.s32.totalorder %s30, 0
      %p104 = por %p102, %p103
      %s106 = sadd.s32 %s105, 1
      %p109 = scmp.eq.s32.totalorder %s24, 1
      %p110 = scmp.ne.s32.totalorder %s105, %s107
      %p111 = scmp.eq.s32.totalorder %s24, 0
      %p112 = por %p110, %p111
      %p113 = scmp.ne.s32.totalorder %s105, %s107
      %p114 = scmp.eq.s32.totalorder %s29, 1
      %p115 = por %p113, %p114
      %p116 = scmp.ne.s32.totalorder %s107, %s108
      %p117 = scmp.eq.s32.totalorder %s29, 0
      %p118 = por %p116, %p117
      %p119 = scmp.ne.s32.totalorder %s107, %s108
      %p120 = scmp.eq.s32.totalorder %s30, 1
      %p121 = por %p119, %p120
      %p123 = scmp.ne.s32.totalorder %s108, %s122
      %p124 = scmp.eq.s32.totalorder %s30, 0
      %p125 = por %p123, %p124
      %s127 = sadd.s32 %s126, 1
      %p130 = scmp.eq.s32.totalorder %s24, 1
      %p131 = scmp.ne.s32.totalorder %s126, %s128
      %p132 = scmp.eq.s32.totalorder %s24, 0
      %p133 = por %p131, %p132
      %p134 = scmp.ne.s32.totalorder %s126, %s128
      %p135 = scmp.eq.s32.totalorder %s29, 1
      %p136 = por %p134, %p135
      %p137 = scmp.ne.s32.totalorder %s128, %s129
      %p138 = scmp.eq.s32.totalorder %s29, 0
      %p139 = por %p137, %p138
      %p140 = scmp.ne.s32.totalorder %s128, %s129
      %p141 = scmp.eq.s32.totalorder %s30, 1
      %p142 = por %p140, %p141
      %p144 = scmp.ne.s32.totalorder %s129, %s143
      %p145 = scmp.eq.s32.totalorder %s30, 0
      %p146 = por %p144, %p145
      %s148 = sadd.s32 %s147, 1
      %p151 = scmp.eq.s32.totalorder %s24, 1
      %p152 = scmp.ne.s32.totalorder %s147, %s149
      %p153 = scmp.eq.s32.totalorder %s24, 0
      %p154 = por %p152, %p153
      %p155 = scmp.ne.s32.totalorder %s147, %s149
      %p156 = scmp.eq.s32.totalorder %s29, 1
      %p157 = por %p155, %p156
      %p158 = scmp.ne.s32.totalorder %s149, %s150
      %p159 = scmp.eq.s32.totalorder %s29, 0
      %p160 = por %p158, %p159
      %p161 = scmp.ne.s32.totalorder %s149, %s150
      %p162 = scmp.eq.s32.totalorder %s30, 1
      %p163 = por %p161, %p162
      %p165 = scmp.ne.s32.totalorder %s150, %s164
      %p166 = scmp.eq.s32.totalorder %s30, 0
      %p167 = por %p165, %p166
      %s169 = sadd.s32 %s168, 1
      %p172 = scmp.eq.s32.totalorder %s24, 1
      %p173 = scmp.ne.s32.totalorder %s168, %s170
      %p174 = scmp.eq.s32.totalorder %s24, 0
      %p175 = por %p173, %p174
      %p176 = scmp.ne.s32.totalorder %s168, %s170
      %p177 = scmp.eq.s32.totalorder %s29, 1
      %p178 = por %p176, %p177
      %p179 = scmp.ne.s32.totalorder %s170, %s171
      %p180 = scmp.eq.s32.totalorder %s29, 0
      %p181 = por %p179, %p180
      %p182 = scmp.ne.s32.totalorder %s170, %s171
      %p183 = scmp.eq.s32.totalorder %s30, 1
      %p184 = por %p182, %p183
      %p186 = scmp.ne.s32.totalorder %s171, %s185
      %p187 = scmp.eq.s32.totalorder %s30, 0
      %p188 = por %p186, %p187
      %s190 = sadd.s32 %s189, 1
      %p193 = scmp.eq.s32.totalorder %s24, 1
      %p194 = scmp.ne.s32.totalorder %s189, %s191
      %p195 = scmp.eq.s32.totalorder %s24, 0
      %p196 = por %p194, %p195
      %p197 = scmp.ne.s32.totalorder %s189, %s191
      %p198 = scmp.eq.s32.totalorder %s29, 1
      %p199 = por %p197, %p198
      %p200 = scmp.ne.s32.totalorder %s191, %s192
      %p201 = scmp.eq.s32.totalorder %s29, 0
      %p202 = por %p200, %p201
      %p203 = scmp.ne.s32.totalorder %s191, %s192
      %p204 = scmp.eq.s32.totalorder %s30, 1
      %p205 = por %p203, %p204
      %p207 = scmp.ne.s32.totalorder %s192, %s206
      %p208 = scmp.eq.s32.totalorder %s30, 0
      %p209 = por %p207, %p208
      %s210 = ssub.s32 %s24, %s31
      %p211 = scmp.eq.s32.totalorder %s210, 0
      %s213 = sadd.s32 %s212, 1
      %s214 = scalar_select %p211, %s212, %s213
      %p217 = pneg %p211
      %p218 = scmp.eq.s32.totalorder %s24, 1
      %p219 = por %p217, %p218
      %p220 = scmp.ne.s32.totalorder %s212, %s215
      %p221 = scmp.eq.s32.totalorder %s24, 0
      %p222 = por %p220, %p221
      %p223 = scmp.ne.s32.totalorder %s212, %s215
      %p224 = scmp.eq.s32.totalorder %s29, 1
      %p225 = por %p223, %p224
      %p226 = scmp.ne.s32.totalorder %s215, %s216
      %p227 = scmp.eq.s32.totalorder %s29, 0
      %p228 = por %p226, %p227
      %p229 = scmp.ne.s32.totalorder %s215, %s216
      %p230 = scmp.eq.s32.totalorder %s30, 1
      %p231 = por %p229, %p230
      %p233 = scmp.ne.s32.totalorder %s216, %s232
      %p234 = scmp.eq.s32.totalorder %s30, 0
      %p235 = por %p233, %p234
      %p236 = scmp.le.s32.totalorder 1, %s24
      %p237 = scmp.lt.s32.totalorder %s24, 3
      %p238 = pnand %p236, %p237
      %p239 = pneg %p238
      // Predicated region
      $region9: #{tpu_custom_call.1} parent=5 // pred_check
        _
      $region10: #{tpu_custom_call.1} parent=5 // pred_check_branch
        %241 = sbr.rel (%p238) target = $region12
      $region11: #{tpu_custom_call.1} parent=5 // pred_region
        %s242 = ssub.s32 %s24, 1
        // Predicated region
        $region13: #{tpu_custom_call.1} parent=11 // pred_check
          %p243 = pneg %p97
        $region14: #{tpu_custom_call.1} parent=11 // pred_check_branch
          %245 = sbr.rel (%p243) target = $region16
        $region15: #{tpu_custom_call.1} parent=11 // pred_region
          %247 = vsyncadd [#allocation6], 0
          %s248 = sshll.u32 %s2, 4
          %s249 = int_to_ptr.hbm [resolvable:$true] %s248
          %s250 = sshll.u32 [#allocation7], 4
          %s251 = int_to_ptr.vmem [resolvable:$true] %s250
          %256 = dma.hbm_to_vmem [thread:$0]  %s249, 3072, %s251, [#allocation6], 192, 192, 12
        $region16: #{tpu_custom_call.1} parent=11 // pred_fallthru
          _
        // Predicated region
        $region17: #{tpu_custom_call.1} parent=11 // pred_check
          %p257 = pneg %p118
        $region18: #{tpu_custom_call.1} parent=11 // pred_check_branch
          %259 = sbr.rel (%p257) target = $region20
        $region19: #{tpu_custom_call.1} parent=11 // pred_region
          %261 = vsyncadd [#allocation9], 0
          %s263 = sshll.u32 %s3, 4
          %s264 = int_to_ptr.hbm [resolvable:$true] %s263
          %s265 = sshll.u32 [#allocation8], 4
          %s266 = int_to_ptr.vmem [resolvable:$true] %s265
          %268 = dma.hbm_to_vmem [thread:$0]  %s264, 48, %s266, [#allocation9]
        $region20: #{tpu_custom_call.1} parent=11 // pred_fallthru
          _
        // Predicated region
        $region21: #{tpu_custom_call.1} parent=11 // pred_check
          %p269 = pneg %p139
        $region22: #{tpu_custom_call.1} parent=11 // pred_check_branch
          %271 = sbr.rel (%p269) target = $region24
        $region23: #{tpu_custom_call.1} parent=11 // pred_region
          %273 = vsyncadd [#allocation9], 0
          %s274 = sshll.u32 %s4, 4
          %s275 = int_to_ptr.hbm [resolvable:$true] %s274
          %s276 = sshll.u32 [#allocation10], 4
          %s277 = int_to_ptr.vmem [resolvable:$true] %s276
          %282 = dma.hbm_to_vmem [thread:$0]  %s275, 1024, %s277, [#allocation9], 64, 64, 4
        $region24: #{tpu_custom_call.1} parent=11 // pred_fallthru
          _
        // Predicated region
        $region25: #{tpu_custom_call.1} parent=11 // pred_check
          %p283 = pneg %p160
        $region26: #{tpu_custom_call.1} parent=11 // pred_check_branch
          %285 = sbr.rel (%p283) target = $region28
        $region27: #{tpu_custom_call.1} parent=11 // pred_region
          _
        $region28: #{tpu_custom_call.1} parent=11 // pred_fallthru
          _
        // Predicated region
        $region29: #{tpu_custom_call.1} parent=11 // pred_check
          %p286 = pneg %p181
        $region30: #{tpu_custom_call.1} parent=11 // pred_check_branch
          %288 = sbr.rel (%p286) target = $region32
        $region31: #{tpu_custom_call.1} parent=11 // pred_region
          _
        $region32: #{tpu_custom_call.1} parent=11 // pred_fallthru
          _
        // Predicated region
        $region33: #{tpu_custom_call.1} parent=11 // pred_check
          %p289 = pneg %p202
        $region34: #{tpu_custom_call.1} parent=11 // pred_check_branch
          %291 = sbr.rel (%p289) target = $region36
        $region35: #{tpu_custom_call.1} parent=11 // pred_region
          _
        $region36: #{tpu_custom_call.1} parent=11 // pred_fallthru
          _
      $region12: #{tpu_custom_call.1} parent=5 // pred_fallthru
        _
      %p292 = scmp.lt.s32.totalorder %s24, 2
      // Predicated region
      $region37: #{tpu_custom_call.1} parent=5 // pred_check
        %p293 = pneg %p292
      $region38: #{tpu_custom_call.1} parent=5 // pred_check_branch
        %295 = sbr.rel (%p293) target = $region40
      $region39: #{tpu_custom_call.1} parent=5 // pred_region
        // Predicated region
        $region41: #{tpu_custom_call.1} parent=39 // pred_check
          %p296 = pneg %p44
        $region42: #{tpu_custom_call.1} parent=39 // pred_check_branch
          %298 = sbr.rel (%p296) target = $region44
        $region43: #{tpu_custom_call.1} parent=39 // pred_region
          %s299 = sand.u32 %s34, 1
          %s300 = scalar_lea.sflag [#allocation3], %s299
          %s301 = sand.u32 %s34, 1
          %s302 = smul.addr %s301, 4
          %s303 = scalar_lea.vmem [#allocation2], %s302
          %305 = vsyncadd %s300, 0
          %s306 = smul.addr %s24, 4
          %s307 = scalar_lea.hbm %s0, %s306
          %s309 = sshll.u32 %s307, 4
          %s310 = int_to_ptr.hbm [resolvable:$true] %s309
          %s311 = sshll.u32 %s303, 4
          %s312 = int_to_ptr.vmem [resolvable:$true] %s311
          %314 = dma.hbm_to_vmem [thread:$0]  %s310, 64, %s312, %s300
        $region44: #{tpu_custom_call.1} parent=39 // pred_fallthru
          _
        // Predicated region
        $region45: #{tpu_custom_call.1} parent=39 // pred_check
          %p315 = pneg %p70
        $region46: #{tpu_custom_call.1} parent=39 // pred_check_branch
          %317 = sbr.rel (%p315) target = $region48
        $region47: #{tpu_custom_call.1} parent=39 // pred_region
          %s318 = sand.u32 %s24, 1
          %s319 = scalar_lea.sflag [#allocation6], %s318
          %s320 = sand.u32 %s60, 1
          %s321 = scalar_lea.vmem [#allocation5], %s320
          %323 = vsyncadd %s319, 0
          %s324 = scalar_lea.hbm %s1, %s24
          %s326 = sshll.u32 %s324, 4
          %s327 = int_to_ptr.hbm [resolvable:$true] %s326
          %s328 = sshll.u32 %s321, 4
          %s329 = int_to_ptr.vmem [resolvable:$true] %s328
          %331 = dma.hbm_to_vmem [thread:$0]  %s327, 16, %s329, %s319
        $region48: #{tpu_custom_call.1} parent=39 // pred_fallthru
          _
      $region40: #{tpu_custom_call.1} parent=5 // pred_fallthru
        _
      %p332 = scmp.le.s32.totalorder 1, %s24
      %p333 = scmp.lt.s32.totalorder %s24, 3
      %p334 = pnand %p332, %p333
      %p335 = pneg %p334
      // Predicated region
      $region49: #{tpu_custom_call.1} parent=5 // pred_check
        _
      $region50: #{tpu_custom_call.1} parent=5 // pred_check_branch
        %337 = sbr.rel (%p334) target = $region52
      $region51: #{tpu_custom_call.1} parent=5 // pred_region
        %s338 = ssub.s32 %s24, 1
        %s339 = sand.u32 %s37, 1
        %s340 = scalar_lea.sflag [#allocation3], %s339
        %s341 = sand.u32 %s37, 1
        %s342 = smul.addr %s341, 4
        %s343 = scalar_lea.vmem [#allocation2], %s342
        // Predicated region
        $region53: #{tpu_custom_call.1} parent=51 // pred_check
          %p344 = pneg %p50
        $region54: #{tpu_custom_call.1} parent=51 // pred_check_branch
          %346 = sbr.rel (%p344) target = $region56
        $region55: #{tpu_custom_call.1} parent=51 // pred_region
          %348 = dma.done %s340, 64
        $region56: #{tpu_custom_call.1} parent=51 // pred_fallthru
          _
        %s349 = sand.u32 %s29, 1
        %s350 = scalar_lea.sflag [#allocation6], %s349
        %s351 = sand.u32 %s63, 1
        %s352 = scalar_lea.vmem [#allocation5], %s351
        // Predicated region
        $region57: #{tpu_custom_call.1} parent=51 // pred_check
          %p353 = pneg %p76
        $region58: #{tpu_custom_call.1} parent=51 // pred_check_branch
          %355 = sbr.rel (%p353) target = $region60
        $region59: #{tpu_custom_call.1} parent=51 // pred_region
          %357 = dma.done %s350, 16
        $region60: #{tpu_custom_call.1} parent=51 // pred_fallthru
          _
        // Predicated region
        $region61: #{tpu_custom_call.1} parent=51 // pred_check
          %p358 = pneg %p97
        $region62: #{tpu_custom_call.1} parent=51 // pred_check_branch
          %360 = sbr.rel (%p358) target = $region64
        $region63: #{tpu_custom_call.1} parent=51 // pred_region
          %362 = dma.done [#allocation6], 3072
        $region64: #{tpu_custom_call.1} parent=51 // pred_fallthru
          _
        // Predicated region
        $region65: #{tpu_custom_call.1} parent=51 // pred_check
          %p363 = pneg %p118
        $region66: #{tpu_custom_call.1} parent=51 // pred_check_branch
          %365 = sbr.rel (%p363) target = $region68
        $region67: #{tpu_custom_call.1} parent=51 // pred_region
          %367 = dma.done [#allocation9], 48
        $region68: #{tpu_custom_call.1} parent=51 // pred_fallthru
          _
        // Predicated region
        $region69: #{tpu_custom_call.1} parent=51 // pred_check
          %p368 = pneg %p139
        $region70: #{tpu_custom_call.1} parent=51 // pred_check_branch
          %370 = sbr.rel (%p368) target = $region72
        $region71: #{tpu_custom_call.1} parent=51 // pred_region
          %372 = dma.done [#allocation9], 1024
        $region72: #{tpu_custom_call.1} parent=51 // pred_fallthru
          _
        %s373 = sand.u32 %s37, 1
        %s374 = scalar_lea.sflag [#allocation3], %s373
        %s375 = sand.u32 %s37, 1
        %s376 = smul.addr %s375, 4
        %s377 = scalar_lea.vmem [#allocation2], %s376
        %p378 = pneg %p50
        %p379 = pneg %p47
        %s380 = sand.u32 %s29, 1
        %s381 = scalar_lea.sflag [#allocation6], %s380
        %s382 = sand.u32 %s63, 1
        %s383 = scalar_lea.vmem [#allocation5], %s382
        %p384 = pneg %p76
        %p385 = pneg %p73
        %p386 = pneg %p97
        %p387 = pneg %p94
        %p388 = pneg %p118
        %p389 = pneg %p115
        %p390 = pneg %p139
        %p391 = pneg %p136
        %p392 = pneg %p160
        %p393 = pneg %p157
        %p394 = pneg %p181
        %p395 = pneg %p178
        %p396 = pneg %p202
        %p397 = pneg %p199
        %p398 = pneg %p228
        %p399 = pneg %p225
        %s400 = sand.u32 %s215, 1
        %s401 = scalar_lea.sflag [#allocation4], %s400
        %s402 = sand.u32 %s215, 1
        %s403 = smul.addr %s402, 4
        %s404 = scalar_lea.vmem [#allocation11], %s403
        %v406 = vld [vmem:[%s343] sm:$0xf]
        %v407 = vunpack.c.l.bf16 %v406
        %v408 = vld [vmem:[%s352] sm:$0x1]
        %v409 = vld [vmem:[#allocation7] sm:$0xff]
        %v410 = vld [vmem:[#allocation7 + $0x8] sm:$0xf]
        %v411 = vld [vmem:[#allocation7 + $0xc] sm:$0xff]
        %v412 = vld [vmem:[#allocation7 + $0x14] sm:$0xf]
        %v413 = vld [vmem:[#allocation7 + $0x18] sm:$0xff]
        %v414 = vld [vmem:[#allocation7 + $0x20] sm:$0xf]
        %v415 = vld [vmem:[#allocation7 + $0x24] sm:$0xff]
        %v416 = vld [vmem:[#allocation7 + $0x2c] sm:$0xf]
        %v417 = vld [vmem:[#allocation7 + $0x30] sm:$0xff]
        %v418 = vld [vmem:[#allocation7 + $0x38] sm:$0xf]
        %v419 = vld [vmem:[#allocation7 + $0x3c] sm:$0xff]
        %v420 = vld [vmem:[#allocation7 + $0x44] sm:$0xf]
        %v421 = vld [vmem:[#allocation7 + $0x48] sm:$0xff]
        %v422 = vld [vmem:[#allocation7 + $0x50] sm:$0xf]
        %v423 = vld [vmem:[#allocation7 + $0x54] sm:$0xff]
        %v424 = vld [vmem:[#allocation7 + $0x5c] sm:$0xf]
        %v425 = vld [vmem:[#allocation7 + $0x60] sm:$0xff]
        %v426 = vld [vmem:[#allocation7 + $0x68] sm:$0xf]
        %v427 = vld [vmem:[#allocation7 + $0x6c] sm:$0xff]
        %v428 = vld [vmem:[#allocation7 + $0x74] sm:$0xf]
        %v429 = vld [vmem:[#allocation7 + $0x78] sm:$0xff]
        %v430 = vld [vmem:[#allocation7 + $0x80] sm:$0xf]
        %v431 = vld [vmem:[#allocation7 + $0x84] sm:$0xff]
        %v432 = vld [vmem:[#allocation7 + $0x8c] sm:$0xf]
        %v433 = vld [vmem:[#allocation7 + $0x90] sm:$0xff]
        %v434 = vld [vmem:[#allocation7 + $0x98] sm:$0xf]
        %v435 = vld [vmem:[#allocation7 + $0x9c] sm:$0xff]
        %v436 = vld [vmem:[#allocation7 + $0xa4] sm:$0xf]
        %v437 = vld [vmem:[#allocation7 + $0xa8] sm:$0xff]
        %v438 = vld [vmem:[#allocation7 + $0xb0] sm:$0xf]
        %v439 = vld [vmem:[#allocation7 + $0xb4] sm:$0xff]
        %v440 = vld [vmem:[#allocation7 + $0xbc] sm:$0xf]
        %v441 = vld [vmem:[#allocation8] sm:$0x7]
        %v443 = vperm.slane %v441, 0
        %v444 = vperm.slane %v441, 1
        %v445 = vperm.slane %v441, 2
        %v481 = vunpack.c.l.b16 %v409
        %v482 = vunpack.c.h.b16 %v409
        %v483 = vunpack.c.l.b16 %v410
        %v484 = vunpack.c.l.b16 %v411
        %v485 = vunpack.c.h.b16 %v411
        %v486 = vunpack.c.l.b16 %v412
        %v487 = vunpack.c.l.b16 %v413
        %v488 = vunpack.c.h.b16 %v413
        %v489 = vunpack.c.l.b16 %v414
        %v490 = vunpack.c.l.b16 %v415
        %v491 = vunpack.c.h.b16 %v415
        %v492 = vunpack.c.l.b16 %v416
        %v493 = vunpack.c.l.b16 %v417
        %v494 = vunpack.c.h.b16 %v417
        %v495 = vunpack.c.l.b16 %v418
        %v496 = vunpack.c.l.b16 %v419
        %v497 = vunpack.c.h.b16 %v419
        %v498 = vunpack.c.l.b16 %v420
        %v499 = vunpack.c.l.b16 %v421
        %v500 = vunpack.c.h.b16 %v421
        %v501 = vunpack.c.l.b16 %v422
        %v502 = vunpack.c.l.b16 %v423
        %v503 = vunpack.c.h.b16 %v423
        %v504 = vunpack.c.l.b16 %v424
        %v505 = vunpack.c.l.b16 %v425
        %v506 = vunpack.c.h.b16 %v425
        %v507 = vunpack.c.l.b16 %v426
        %v508 = vunpack.c.l.b16 %v427
        %v509 = vunpack.c.h.b16 %v427
        %v510 = vunpack.c.l.b16 %v428
        %v511 = vunpack.c.l.b16 %v429
        %v512 = vunpack.c.h.b16 %v429
        %v513 = vunpack.c.l.b16 %v430
        %v514 = vunpack.c.l.b16 %v431
        %v515 = vunpack.c.h.b16 %v431
        %v516 = vunpack.c.l.b16 %v432
        %v517 = vunpack.c.l.b16 %v433
        %v518 = vunpack.c.h.b16 %v433
        %v519 = vunpack.c.l.b16 %v434
        %v520 = vunpack.c.l.b16 %v435
        %v521 = vunpack.c.h.b16 %v435
        %v522 = vunpack.c.l.b16 %v436
        %v523 = vunpack.c.l.b16 %v437
        %v524 = vunpack.c.h.b16 %v437
        %v525 = vunpack.c.l.b16 %v438
        %v526 = vunpack.c.l.b16 %v439
        %v527 = vunpack.c.h.b16 %v439
        %v528 = vunpack.c.l.b16 %v440
        %v529 = vpack.c.b16 %v484, %v481
        %v530 = vpack.c.b16 %v485, %v482
        %v531 = vpack.c.b16 %v486, %v483
        %v532 = vpack.c.b16 %v490, %v487
        %v533 = vpack.c.b16 %v491, %v488
        %v534 = vpack.c.b16 %v492, %v489
        %v535 = vpack.c.b16 %v496, %v493
        %v536 = vpack.c.b16 %v497, %v494
        %v537 = vpack.c.b16 %v498, %v495
        %v538 = vpack.c.b16 %v502, %v499
        %v539 = vpack.c.b16 %v503, %v500
        %v540 = vpack.c.b16 %v504, %v501
        %v541 = vpack.c.b16 %v508, %v505
        %v542 = vpack.c.b16 %v509, %v506
        %v543 = vpack.c.b16 %v510, %v507
        %v544 = vpack.c.b16 %v514, %v511
        %v545 = vpack.c.b16 %v515, %v512
        %v546 = vpack.c.b16 %v516, %v513
        %v547 = vpack.c.b16 %v520, %v517
        %v548 = vpack.c.b16 %v521, %v518
        %v549 = vpack.c.b16 %v522, %v519
        %v550 = vpack.c.b16 %v526, %v523
        %v551 = vpack.c.b16 %v527, %v524
        %v552 = vpack.c.b16 %v528, %v525
        %577 = vmatpush.bf16.msra.mxu0 %v550
        %578 = vmatpush.bf16.msra.mxu0 %v547
        %579 = vmatpush.bf16.msra.mxu0 %v544
        %580 = vmatpush.bf16.msra.mxu0 %v541
        %581 = vmatpush.bf16.msra.mxu0 %v538
        %582 = vmatpush.bf16.msra.mxu0 %v535
        %583 = vmatpush.bf16.msra.mxu0 %v532
        %584 = vmatpush.bf16.msra.mxu0 %v529
        %585 = vmatmul.bf16.gmra.mxu0 %v406
        %v586 = vpop.f32.mrf.mxu0
        %v587 = vadd.f32 %v443, %v586
        %v588 = vpop.f32.mrf.mxu0
        %589 = vdwg.mxu0
        %590 = vmatpush.bf16.msra.mxu0 %v551
        %591 = vmatpush.bf16.msra.mxu0 %v548
        %592 = vmatpush.bf16.msra.mxu0 %v545
        %593 = vmatpush.bf16.msra.mxu0 %v542
        %594 = vmatpush.bf16.msra.mxu0 %v539
        %595 = vmatpush.bf16.msra.mxu0 %v536
        %596 = vmatpush.bf16.msra.mxu0 %v533
        %597 = vmatpush.bf16.msra.mxu0 %v530
        %598 = vmatmul.bf16.gmra.mxu0 %v406
        %v599 = vpop.f32.mrf.mxu0
        %v600 = vadd.f32 %v444, %v599
        %v601 = vpop.f32.mrf.mxu0
        %602 = vdwg.mxu0
        %603 = vmatpush.bf16.msra.mxu0 %v552
        %604 = vmatpush.bf16.msra.mxu0 %v549
        %605 = vmatpush.bf16.msra.mxu0 %v546
        %606 = vmatpush.bf16.msra.mxu0 %v543
        %607 = vmatpush.bf16.msra.mxu0 %v540
        %608 = vmatpush.bf16.msra.mxu0 %v537
        %609 = vmatpush.bf16.msra.mxu0 %v534
        %610 = vmatpush.bf16.msra.mxu0 %v531
        %611 = vmatmul.bf16.gmra.mxu0 %v406
        %v612 = vpop.f32.mrf.mxu0
        %v613 = vadd.f32 %v445, %v612
        %v614 = vpop.f32.mrf.mxu0
        %615 = vdwg.mxu0
        %v616 = vpack.c.bf16 %v587, %v587
        %v617 = vpack.c.bf16 %v600, %v600
        %v618 = vpack.c.bf16 %v613, %v613
        %vm619 = vcmask 261120
        %v621 = vsel %vm619, %v616, 0
        %v624 = vsel %vm619, %v617, 0
        %626 = vmatpush.bf16.xpose.msra.mxu0 0
        %627 = vmatpush.bf16.xpose.msra.mxu0 0
        %628 = vmatpush.bf16.xpose.msra.mxu0 0
        %629 = vmatpush.bf16.xpose.msra.mxu0 0
        %630 = vmatpush.bf16.xpose.msra.mxu0 0
        %631 = vmatpush.bf16.xpose.msra.mxu0 0
        %632 = vmatpush.bf16.xpose.msra.mxu0 0
        %633 = vmatpush.bf16.xpose.msra.mxu0 %v624
        %634 = vmatmul.bf16.gmra.mxu0 %v621
        %v635 = vpop.f32.mrf.mxu0
        %v636 = vadd.f32 0.0, %v635
        %v637 = vpop.f32.mrf.mxu0
        %638 = vdwg.mxu0
        %v639 = vmul.f32 %v636, 0.17677669
        %v641 = vperm.slane %v408, 0
        %v643 = vadd.f32 %v639, %v641
        %vm644 = vcmask 64512
        %v645 = vsel %vm644, %v643, -inf
        %646 = vmax.xlane.f32.xlu0 %v645
        %v647 = vpop.xlane.xlu0 %646
        %v648 = vsub.f32 %v643, %v647
        %v649 = vmul.f32 %v648, 1.442695
        %v650 = vpow.pop %v649
        %v651 = vsel %vm644, %v650, 0.0
        %652 = vadd.xlane.f32.xlu0 %v651
        %v653 = vpop.xlane.xlu0 %652
        %v654 = vrcp.pop %v653
        %v655 = vmul.f32 %v650, %v654
        %v656 = vpack.c.bf16 %v655, %v655
        %v658 = vsel %vm644, %v656, 0
        %vm660 = vcmask 1043456
        %v662 = vsel %vm660, %v618, 0
        %664 = vmatpush.bf16.msra.mxu0 0
        %665 = vmatpush.bf16.msra.mxu0 0
        %666 = vmatpush.bf16.msra.mxu0 0
        %667 = vmatpush.bf16.msra.mxu0 0
        %668 = vmatpush.bf16.msra.mxu0 0
        %669 = vmatpush.bf16.msra.mxu0 0
        %670 = vmatpush.bf16.msra.mxu0 0
        %671 = vmatpush.bf16.msra.mxu0 %v662
        %672 = vmatmul.bf16.gmra.mxu0 %v658
        %v673 = vpop.f32.mrf.mxu0
        %v674 = vadd.f32 0.0, %v673
        %v675 = vpop.f32.mrf.mxu0
        %676 = vdwg.mxu0
        %678 = vrot.lane.b32.xlu0 %v616, 96
        %v679 = vpop.permute.xlu0 %678
        %681 = vrot.lane.b32.xlu0 %v617, 96
        %v682 = vpop.permute.xlu0 %681
        %v684 = vsel %vm619, %v679, 0
        %v687 = vsel %vm619, %v682, 0
        %689 = vmatpush.bf16.xpose.msra.mxu0 0
        %690 = vmatpush.bf16.xpose.msra.mxu0 0
        %691 = vmatpush.bf16.xpose.msra.mxu0 0
        %692 = vmatpush.bf16.xpose.msra.mxu0 0
        %693 = vmatpush.bf16.xpose.msra.mxu0 0
        %694 = vmatpush.bf16.xpose.msra.mxu0 0
        %695 = vmatpush.bf16.xpose.msra.mxu0 0
        %696 = vmatpush.bf16.xpose.msra.mxu0 %v687
        %697 = vmatmul.bf16.gmra.mxu0 %v684
        %v698 = vpop.f32.mrf.mxu0
        %v699 = vadd.f32 0.0, %v698
        %v700 = vpop.f32.mrf.mxu0
        %701 = vdwg.mxu0
        %v702 = vmul.f32 %v699, 0.17677669
        %v703 = vadd.f32 %v702, %v641
        %v704 = vsel %vm644, %v703, -inf
        %705 = vmax.xlane.f32.xlu0 %v704
        %v706 = vpop.xlane.xlu0 %705
        %v707 = vsub.f32 %v703, %v706
        %v708 = vmul.f32 %v707, 1.442695
        %v709 = vpow.pop %v708
        %v710 = vsel %vm644, %v709, 0.0
        %711 = vadd.xlane.f32.xlu0 %v710
        %v712 = vpop.xlane.xlu0 %711
        %v713 = vrcp.pop %v712
        %v714 = vmul.f32 %v709, %v713
        %v715 = vpack.c.bf16 %v714, %v714
        %717 = vrot.lane.b32.xlu0 %v618, 96
        %v718 = vpop.permute.xlu0 %717
        %v720 = vsel %vm644, %v715, 0
        %v723 = vsel %vm660, %v718, 0
        %725 = vmatpush.bf16.msra.mxu0 0
        %726 = vmatpush.bf16.msra.mxu0 0
        %727 = vmatpush.bf16.msra.mxu0 0
        %728 = vmatpush.bf16.msra.mxu0 0
        %729 = vmatpush.bf16.msra.mxu0 0
        %730 = vmatpush.bf16.msra.mxu0 0
        %731 = vmatpush.bf16.msra.mxu0 0
        %732 = vmatpush.bf16.msra.mxu0 %v723
        %733 = vmatmul.bf16.gmra.mxu0 %v720
        %v734 = vpop.f32.mrf.mxu0
        %v735 = vadd.f32 0.0, %v734
        %v736 = vpop.f32.mrf.mxu0
        %737 = vdwg.mxu0
        %738 = vrot.lane.b32.xlu0 %v616, 64
        %v739 = vpop.permute.xlu0 %738
        %740 = vrot.lane.b32.xlu0 %v617, 64
        %v741 = vpop.permute.xlu0 %740
        %v743 = vsel %vm619, %v739, 0
        %v746 = vsel %vm619, %v741, 0
        %748 = vmatpush.bf16.xpose.msra.mxu0 0
        %749 = vmatpush.bf16.xpose.msra.mxu0 0
        %750 = vmatpush.bf16.xpose.msra.mxu0 0
        %751 = vmatpush.bf16.xpose.msra.mxu0 0
        %752 = vmatpush.bf16.xpose.msra.mxu0 0
        %753 = vmatpush.bf16.xpose.msra.mxu0 0
        %754 = vmatpush.bf16.xpose.msra.mxu0 0
        %755 = vmatpush.bf16.xpose.msra.mxu0 %v746
        %756 = vmatmul.bf16.gmra.mxu0 %v743
        %v757 = vpop.f32.mrf.mxu0
        %v758 = vadd.f32 0.0, %v757
        %v759 = vpop.f32.mrf.mxu0
        %760 = vdwg.mxu0
        %v761 = vmul.f32 %v758, 0.17677669
        %v762 = vadd.f32 %v761, %v641
        %v763 = vsel %vm644, %v762, -inf
        %764 = vmax.xlane.f32.xlu0 %v763
        %v765 = vpop.xlane.xlu0 %764
        %v766 = vsub.f32 %v762, %v765
        %v767 = vmul.f32 %v766, 1.442695
        %v768 = vpow.pop %v767
        %v769 = vsel %vm644, %v768, 0.0
        %770 = vadd.xlane.f32.xlu0 %v769
        %v771 = vpop.xlane.xlu0 %770
        %v772 = vrcp.pop %v771
        %v773 = vmul.f32 %v768, %v772
        %v774 = vpack.c.bf16 %v773, %v773
        %775 = vrot.lane.b32.xlu0 %v618, 64
        %v776 = vpop.permute.xlu0 %775
        %v778 = vsel %vm644, %v774, 0
        %v781 = vsel %vm660, %v776, 0
        %783 = vmatpush.bf16.msra.mxu0 0
        %784 = vmatpush.bf16.msra.mxu0 0
        %785 = vmatpush.bf16.msra.mxu0 0
        %786 = vmatpush.bf16.msra.mxu0 0
        %787 = vmatpush.bf16.msra.mxu0 0
        %788 = vmatpush.bf16.msra.mxu0 0
        %789 = vmatpush.bf16.msra.mxu0 0
        %790 = vmatpush.bf16.msra.mxu0 %v781
        %791 = vmatmul.bf16.gmra.mxu0 %v778
        %v792 = vpop.f32.mrf.mxu0
        %v793 = vadd.f32 0.0, %v792
        %v794 = vpop.f32.mrf.mxu0
        %795 = vdwg.mxu0
        %796 = vrot.lane.b32.xlu0 %v616, 32
        %v797 = vpop.permute.xlu0 %796
        %798 = vrot.lane.b32.xlu0 %v617, 32
        %v799 = vpop.permute.xlu0 %798
        %v801 = vsel %vm619, %v797, 0
        %v804 = vsel %vm619, %v799, 0
        %806 = vmatpush.bf16.xpose.msra.mxu0 0
        %807 = vmatpush.bf16.xpose.msra.mxu0 0
        %808 = vmatpush.bf16.xpose.msra.mxu0 0
        %809 = vmatpush.bf16.xpose.msra.mxu0 0
        %810 = vmatpush.bf16.xpose.msra.mxu0 0
        %811 = vmatpush.bf16.xpose.msra.mxu0 0
        %812 = vmatpush.bf16.xpose.msra.mxu0 0
        %813 = vmatpush.bf16.xpose.msra.mxu0 %v804
        %814 = vmatmul.bf16.gmra.mxu0 %v801
        %v815 = vpop.f32.mrf.mxu0
        %v816 = vadd.f32 0.0, %v815
        %v817 = vpop.f32.mrf.mxu0
        %818 = vdwg.mxu0
        %v819 = vmul.f32 %v816, 0.17677669
        %v820 = vadd.f32 %v819, %v641
        %v821 = vsel %vm644, %v820, -inf
        %822 = vmax.xlane.f32.xlu0 %v821
        %v823 = vpop.xlane.xlu0 %822
        %v824 = vsub.f32 %v820, %v823
        %v825 = vmul.f32 %v824, 1.442695
        %v826 = vpow.pop %v825
        %v827 = vsel %vm644, %v826, 0.0
        %828 = vadd.xlane.f32.xlu0 %v827
        %v829 = vpop.xlane.xlu0 %828
        %v830 = vrcp.pop %v829
        %v831 = vmul.f32 %v826, %v830
        %v832 = vpack.c.bf16 %v831, %v831
        %833 = vrot.lane.b32.xlu0 %v618, 32
        %v834 = vpop.permute.xlu0 %833
        %v836 = vsel %vm644, %v832, 0
        %v839 = vsel %vm660, %v834, 0
        %841 = vmatpush.bf16.msra.mxu0 0
        %842 = vmatpush.bf16.msra.mxu0 0
        %843 = vmatpush.bf16.msra.mxu0 0
        %844 = vmatpush.bf16.msra.mxu0 0
        %845 = vmatpush.bf16.msra.mxu0 0
        %846 = vmatpush.bf16.msra.mxu0 0
        %847 = vmatpush.bf16.msra.mxu0 0
        %848 = vmatpush.bf16.msra.mxu0 %v839
        %849 = vmatmul.bf16.gmra.mxu0 %v836
        %v850 = vpop.f32.mrf.mxu0
        %v851 = vadd.f32 0.0, %v850
        %v852 = vpop.f32.mrf.mxu0
        %853 = vdwg.mxu0
        %855 = vrot.lane.b32.xlu0 %v735, 32
        %v856 = vpop.permute.xlu0 %855
        %859 = vrot.lane.b32.xlu0 %v793, 64
        %v860 = vpop.permute.xlu0 %859
        %863 = vrot.lane.b32.xlu0 %v851, 96
        %v864 = vpop.permute.xlu0 %863
        %v866 = vsel %vm619, %v674, %v856
        %vm867 = vcmask 523264
        %v868 = vsel %vm867, %v866, %v860
        %vm869 = vcmask 785408
        %v870 = vsel %vm869, %v868, %v864
        %v871 = vpack.c.bf16 %v870, %v870
        %v872 = vld [vmem:[#allocation10] sm:$0xf]
        %v873 = vld [vmem:[#allocation10 + $0x4] sm:$0xf]
        %v874 = vld [vmem:[#allocation10 + $0x8] sm:$0xf]
        %v875 = vld [vmem:[#allocation10 + $0xc] sm:$0xf]
        %v876 = vld [vmem:[#allocation10 + $0x10] sm:$0xf]
        %v877 = vld [vmem:[#allocation10 + $0x14] sm:$0xf]
        %v878 = vld [vmem:[#allocation10 + $0x18] sm:$0xf]
        %v879 = vld [vmem:[#allocation10 + $0x1c] sm:$0xf]
        %v880 = vld [vmem:[#allocation10 + $0x20] sm:$0xf]
        %v881 = vld [vmem:[#allocation10 + $0x24] sm:$0xf]
        %v882 = vld [vmem:[#allocation10 + $0x28] sm:$0xf]
        %v883 = vld [vmem:[#allocation10 + $0x2c] sm:$0xf]
        %v884 = vld [vmem:[#allocation10 + $0x30] sm:$0xf]
        %v885 = vld [vmem:[#allocation10 + $0x34] sm:$0xf]
        %v886 = vld [vmem:[#allocation10 + $0x38] sm:$0xf]
        %v887 = vld [vmem:[#allocation10 + $0x3c] sm:$0xf]
        %v888 = vld [vmem:[%s5] sm:$0x1]
        %v890 = vperm.slane %v888, 0
        %v908 = vunpack.c.l.b16 %v872
        %v909 = vunpack.c.l.b16 %v873
        %v910 = vunpack.c.l.b16 %v874
        %v911 = vunpack.c.l.b16 %v875
        %v912 = vunpack.c.l.b16 %v876
        %v913 = vunpack.c.l.b16 %v877
        %v914 = vunpack.c.l.b16 %v878
        %v915 = vunpack.c.l.b16 %v879
        %v916 = vunpack.c.l.b16 %v880
        %v917 = vunpack.c.l.b16 %v881
        %v918 = vunpack.c.l.b16 %v882
        %v919 = vunpack.c.l.b16 %v883
        %v920 = vunpack.c.l.b16 %v884
        %v921 = vunpack.c.l.b16 %v885
        %v922 = vunpack.c.l.b16 %v886
        %v923 = vunpack.c.l.b16 %v887
        %v924 = vpack.c.b16 %v909, %v908
        %v925 = vpack.c.b16 %v911, %v910
        %v926 = vpack.c.b16 %v913, %v912
        %v927 = vpack.c.b16 %v915, %v914
        %v928 = vpack.c.b16 %v917, %v916
        %v929 = vpack.c.b16 %v919, %v918
        %v930 = vpack.c.b16 %v921, %v920
        %v931 = vpack.c.b16 %v923, %v922
        %940 = vmatpush.bf16.msra.mxu0 %v931
        %941 = vmatpush.bf16.msra.mxu0 %v930
        %942 = vmatpush.bf16.msra.mxu0 %v929
        %943 = vmatpush.bf16.msra.mxu0 %v928
        %944 = vmatpush.bf16.msra.mxu0 %v927
        %945 = vmatpush.bf16.msra.mxu0 %v926
        %946 = vmatpush.bf16.msra.mxu0 %v925
        %947 = vmatpush.bf16.msra.mxu0 %v924
        %948 = vmatmul.bf16.gmra.mxu0 %v871
        %v949 = vpop.f32.mrf.mxu0
        %v950 = vadd.f32 %v890, %v949
        %v951 = vpop.f32.mrf.mxu0
        %952 = vdwg.mxu0
        %v953 = vadd.f32 %v407, %v950
        %954 = vadd.xlane.f32.xlu0 %v953
        %v955 = vpop.xlane.xlu0 %954
        %v956 = vrcp.pop 128.0
        %v957 = vmul.f32 128.0, %v956
        %v958 = vsub.f32 1.0, %v957
        %v959 = vmul.f32 %v956, %v958
        %v960 = vadd.f32 %v956, %v959
        %vm961 = vweird.f32 %v956
        %v962 = vsel %vm961, %v956, %v960
        %v963 = vmul.f32 %v955, %v962
        %v964 = vsub.f32 %v953, %v963
        %v965 = vmul.f32 %v964, %v964
        %966 = vadd.xlane.f32.xlu0 %v965
        %v967 = vpop.xlane.xlu0 %966
        %v968 = vmul.f32 %v967, %v962
        %v969 = vadd.f32 %v968, 1e-05
        %v970 = vrsqrt.pop %v969
        %v971 = vmul.f32 %v970, %v969
        %v972 = vmul.f32 %v971, %v970
        %v973 = vmul.f32 0.5, %v972
        %v974 = vsub.f32 1.5, %v973
        %v975 = vmul.f32 %v970, %v974
        %vm976 = vweird.f32 %v969
        %vm977 = vweird.f32 %v970
        %vm978 = vmor %vm976, %vm977
        %v979 = vsel %vm978, %v970, %v975
        %v980 = vmul.f32 %v964, %v979
        %v981 = vld [vmem:[%s6] sm:$0x1]
        %v983 = vperm.slane %v981, 0
        %v985 = vmul.f32 %v980, %v983
        %v986 = vld [vmem:[%s7] sm:$0x1]
        %v988 = vperm.slane %v986, 0
        %v990 = vadd.f32 %v985, %v988
        %v991 = vpack.c.bf16 %v990, %v990
        %992 = vst [vmem:[%s404] sm:$0xf] %v991
        %s993 = sand.u32 %s215, 1
        %s994 = scalar_lea.sflag [#allocation4], %s993
        %s995 = sand.u32 %s215, 1
        %s996 = smul.addr %s995, 4
        %s997 = scalar_lea.vmem [#allocation11], %s996
        // Predicated region
        $region73: #{tpu_custom_call.1} parent=51 // pred_check
          %p998 = pneg %p225
        $region74: #{tpu_custom_call.1} parent=51 // pred_check_branch
          %1000 = sbr.rel (%p998) target = $region76
        $region75: #{tpu_custom_call.1} parent=51 // pred_region
          %1002 = vsyncadd %s994, 0
          %s1003 = smul.addr %s29, 4
          %s1004 = scalar_lea.hbm %s8, %s1003
          %s1006 = sshll.u32 %s997, 4
          %s1007 = int_to_ptr.vmem [resolvable:$true] %s1006
          %s1008 = sshll.u32 %s1004, 4
          %s1009 = int_to_ptr.hbm [resolvable:$true] %s1008
          %1011 = dma.vmem_to_hbm [thread:$0]  %s1007, 64, %s1009, %s994
        $region76: #{tpu_custom_call.1} parent=51 // pred_fallthru
          _
      $region52: #{tpu_custom_call.1} parent=5 // pred_fallthru
        _
      %p1012 = scmp.le.s32.totalorder 2, %s24
      // Predicated region
      $region77: #{tpu_custom_call.1} parent=5 // pred_check
        %p1013 = pneg %p1012
      $region78: #{tpu_custom_call.1} parent=5 // pred_check_branch
        %1015 = sbr.rel (%p1013) target = $region80
      $region79: #{tpu_custom_call.1} parent=5 // pred_region
        %s1016 = ssub.s32 %s24, 2
        // Predicated region
        $region81: #{tpu_custom_call.1} parent=79 // pred_check
          %p1017 = pneg %p231
        $region82: #{tpu_custom_call.1} parent=79 // pred_check_branch
          %1019 = sbr.rel (%p1017) target = $region84
        $region83: #{tpu_custom_call.1} parent=79 // pred_region
          %s1020 = sand.u32 %s216, 1
          %s1021 = scalar_lea.sflag [#allocation4], %s1020
          %s1022 = sand.u32 %s216, 1
          %s1023 = smul.addr %s1022, 4
          %s1024 = scalar_lea.vmem [#allocation11], %s1023
          %1026 = dma.done %s1021, 64
        $region84: #{tpu_custom_call.1} parent=79 // pred_fallthru
          _
      $region80: #{tpu_custom_call.1} parent=5 // pred_fallthru
        _
    $region6: #{tpu_custom_call.1} parent=1 // loop_footer
      %s28 = sadd.s32 1, %s24
    $region7: #{tpu_custom_call.1} parent=1 // loop_footer_branch
      %23 = sbr.rel target = $region3
    $region8: #{tpu_custom_call.1} parent=1 // loop_exit
      _
    %1027 = vsyncpa [#allocation3], 1
    %s1028 = scalar_lea.sflag [#allocation3], 1
    %1029 = vsyncpa %s1028, 1
    %1030 = vsyncpa [#allocation6], 1
    %s1031 = scalar_lea.sflag [#allocation6], 1
    %1032 = vsyncpa %s1031, 1
    %1033 = vsyncpa [#allocation9], 1
    %1034 = vsyncpa [#allocation4], 1
    %s1035 = scalar_lea.sflag [#allocation4], 1
    %1036 = vsyncpa %s1035, 1

</llo_original>
